<compile_context>
chip_gen: v7x
topology: tpu7x:2x2x1
jax: 0.10.0
libtpu: 0.0.40
codegen_flags: <defaults>
</compile_context>

<pallas_src>
import functools

import jax
import jax.numpy as jnp
from jax.experimental import pallas as pl
from jax.experimental.pallas import tpu as pltpu


SEQ_LEN = 100   # SMILES sequence length (encoding='drug')
EMB_LEN = 107   # padded so conv1 emits 104 (multiple of 8) positions
CONV_TB = 8     # sequences per conv grid step (VMEM-safe on v5e's 16 MiB)

# (name, c_in_true, c_in_pad, c_out_true, c_out_pad, kernel, l_out_pad)
# c_in_pad of conv1 == embedding dim (set at init); valid lengths are 97/92/85.
_CONV_GEOM = (('conv1', 40, 128, 4, 104),
              ('conv2', 80, 128, 6, 96),
              ('conv3', 160, 256, 8, 88))
_FC_L_VALID, _FC_C_VALID, _FC_L_PAD, _FC_C_PAD = 85, 160, 88, 256


def _zmap2(i):  # index map for full-array 2-D blocks under grid=(1,)
    return (0, 0)


# ----------------------------------------------------------------------------
# Fused Conv1d (channels-last): in-kernel im2col + one matmul + bias + ReLU
# ----------------------------------------------------------------------------
def _conv1d_cl_kernel(x_ref, w_ref, b_ref, o_ref, *, ksize, l_out, relu):
    # x_ref: [TB, L_in, C_in] bf16, w_ref: [K*C_in, C_out] bf16 (tap-major),
    # b_ref: [1, C_out] f32, o_ref: [TB, L_out, C_out] bf16
    x = x_ref[...]
    tb, _, c_in = x.shape
    # im2col with tap-major last axis (matches weight rows k*C_in + ci);
    # l_out is a multiple of 8 so the collapse reshape is tile-aligned.
    cols = jnp.concatenate([x[:, k:k + l_out, :] for k in range(ksize)],
                           axis=-1)                        # [TB, L_out, K*C_in]
    cols = cols.reshape(tb * l_out, ksize * c_in)          # M = TB * L_out
    acc = jnp.dot(cols, w_ref[...], preferred_element_type=jnp.float32)
    acc = acc + b_ref[...]
    if relu:
        acc = jnp.maximum(acc, 0.0)
    o_ref[...] = acc.reshape(tb, l_out, -1).astype(o_ref.dtype)


def pallas_conv1d_cl(x, w2d, b, ksize, l_out, relu=True, tb=CONV_TB):
    """Channels-last Conv1d. x: [B, L_in, C_in] bf16 (B % tb == 0),
    w2d: [K*C_in, C_out] bf16, b: [1, C_out] f32 -> [B, L_out, C_out] bf16."""
    B, L_in, C_in = x.shape
    KC, C_out = w2d.shape
    assert KC == ksize * C_in and B % tb == 0
    kernel = functools.partial(_conv1d_cl_kernel, ksize=ksize, l_out=l_out,
                               relu=relu)
    return pl.pallas_call(
        kernel,
        out_shape=jax.ShapeDtypeStruct((B, l_out, C_out), jnp.bfloat16),
        grid=(B // tb,),
        in_specs=[
            pl.BlockSpec((tb, L_in, C_in), lambda i: (i, 0, 0)),
            pl.BlockSpec((KC, C_out), lambda i: (0, 0)),
            pl.BlockSpec((1, C_out), lambda i: (0, 0)),
        ],
        out_specs=pl.BlockSpec((tb, l_out, C_out), lambda i: (i, 0, 0)),
        compiler_params=pltpu.CompilerParams(dimension_semantics=("parallel",)),
    )(x, w2d, b)


# ----------------------------------------------------------------------------
# Linear (fc): resident bf16 weight, single K block, grid over M rows
# ----------------------------------------------------------------------------
def _linear_kernel(x_ref, w_ref, b_ref, o_ref, *, relu):
    acc = jnp.dot(x_ref[...], w_ref[...], preferred_element_type=jnp.float32)
    acc = acc + b_ref[...]
    if relu:
        acc = jnp.maximum(acc, 0.0)
    o_ref[...] = acc.astype(o_ref.dtype)


def pallas_linear(x, w, b, relu=False, tm=256):
    """out = relu?(x @ w + b). x: [M, K] bf16, w: [K, N] bf16, b: [1, N] f32."""
    M, K = x.shape
    Kw, N = w.shape
    assert K == Kw
    tm = min(tm, M)
    return pl.pallas_call(
        functools.partial(_linear_kernel, relu=relu),
        out_shape=jax.ShapeDtypeStruct((M, N), jnp.float32),
        grid=(pl.cdiv(M, tm),),
        in_specs=[
            pl.BlockSpec((tm, K), lambda i: (i, 0)),
            pl.BlockSpec((K, N), lambda i: (0, 0)),
            pl.BlockSpec((1, N), lambda i: (0, 0)),
        ],
        out_specs=pl.BlockSpec((tm, N), lambda i: (i, 0)),
        compiler_params=pltpu.CompilerParams(dimension_semantics=("parallel",)),
    )(x, w, b)


# ----------------------------------------------------------------------------
# CNN feature encoder (encoding='drug': vocab 65, seq len 100)
# ----------------------------------------------------------------------------
def cnn_forward(p, tokens, tb=CONV_TB):
    B, L = tokens.shape
    b_pad = pl.cdiv(B, tb) * tb
    # Pad batch / length with padding_idx (=0) tokens; padded positions only
    # ever multiply zero fc-weight rows (folded in at init), so they are inert.
    tok = jnp.zeros((b_pad, EMB_LEN), tokens.dtype).at[:B, :L].set(tokens)
    # TODO(synk): nn.Embedding gather stays in XLA (data-dependent row lookup).
    x = p['embedding'][tok]                                 # [b_pad, 107, D] bf16
    for name, _, _, k, l_out in _CONV_GEOM:
        lp = p[name]
        x = pallas_conv1d_cl(x, lp['w'], lp['b'], k, l_out, relu=True, tb=tb)
    # channels-last flatten; fc weight rows were permuted / zero-padded at init
    # so this equals PyTorch's channel-major x.view(B, -1) @ fc_w (no runtime pad)
    flat = x.reshape(b_pad, -1)                             # [b_pad, 22528] bf16
    feat = pallas_linear(flat, p['fc']['w'], p['fc']['b'], relu=False)
    return feat[:B]


# ----------------------------------------------------------------------------
# Hetero GraphSAGE encoder (to_hetero(..., aggr='sum') of a 2-layer GNNEncoder)
# fused into ONE Pallas kernel per layer (all edge types + sum + ReLU).
# ----------------------------------------------------------------------------
def _mean_adj(edge_index, n_src, n_dst):
    # Row-normalized dense adjacency: A[i, j] = 1/deg_in(i) per edge j->i.
    # TODO(synk): scatter-add adjacency build stays in XLA; for large graphs
    # replace dense A@X with a Pallas segment-sum (PrefetchScalarGridSpec).
    src, dst = edge_index[0], edge_index[1]
    a = jnp.zeros((n_dst, n_src), jnp.float32).at[dst, src].add(1.0)
    deg = jnp.sum(a, axis=1, keepdims=True)
    return a / jnp.maximum(deg, 1.0)


def _make_hetero_sage_kernel(plan, n_inputs, relu):
    # plan: tuple over dst node types of
    #   (x_dst_input_idx, ((adj_idx, x_src_idx, wl_idx, bl_idx, wr_idx), ...))
    def kernel(*refs):
        in_refs = refs[:n_inputs]
        out_refs = refs[n_inputs:]
        for o_ref, (xd_i, entries) in zip(out_refs, plan):
            xd = in_refs[xd_i][...]                          # bf16
            out = jnp.zeros(o_ref.shape, jnp.float32)
            for adj_i, xs_i, wl_i, bl_i, wr_i in entries:
                # SAGEConv: lin_l(mean_neighbors(x_src)) + lin_r(x_dst)
                agg = jnp.dot(in_refs[adj_i][...], in_refs[xs_i][...],
                              preferred_element_type=jnp.float32)
                c = jnp.dot(agg.astype(jnp.bfloat16), in_refs[wl_i][...],
                            preferred_element_type=jnp.float32)
                c = c + in_refs[bl_i][...]
                c = c + jnp.dot(xd, in_refs[wr_i][...],
                                preferred_element_type=jnp.float32)
                out = out + c                      # to_hetero aggr='sum'
            if relu:
                out = jnp.maximum(out, 0.0)
            o_ref[...] = out.astype(o_ref.dtype)
    return kernel


def hetero_sage_layer(x_dict, edge_index_dict, layer_params, relu):
    # TODO(synk): for large graphs tile the dst-node dim (256-512 row blocks,
    # "parallel") to fit v7x's 64 MiB VMEM and use both TensorCores.
    inputs, in_specs = [], []

    def add_input(arr):
        inputs.append(arr)
        in_specs.append(pl.BlockSpec(arr.shape, _zmap2))
        return len(inputs) - 1

    # bf16 for all MXU operands; biases / accumulation stay f32.
    x_idx = {nt: add_input(x.astype(jnp.bfloat16)) for nt, x in x_dict.items()}

    per_dst = {}
    for et, ei in edge_index_dict.items():
        src, _, dst = et
        adj = _mean_adj(ei, x_dict[src].shape[0],
                        x_dict[dst].shape[0]).astype(jnp.bfloat16)
        pp = layer_params[et]
        per_dst.setdefault(dst, []).append(
            (add_input(adj), x_idx[src], add_input(pp['wl']),
             add_input(pp['bl']), add_input(pp['wr'])))

    dst_list = list(per_dst.keys())
    H = next(iter(layer_params.values()))['wl'].shape[1]
    plan = tuple((x_idx[d], tuple(per_dst[d])) for d in dst_list)

    kernel = _make_hetero_sage_kernel(plan, len(inputs), relu)
    out_shape = tuple(jax.ShapeDtypeStruct((x_dict[d].shape[0], H), jnp.float32)
                      for d in dst_list)
    out_specs = tuple(pl.BlockSpec((x_dict[d].shape[0], H), _zmap2)
                      for d in dst_list)
    outs = pl.pallas_call(
        kernel,
        out_shape=out_shape,
        grid=(1,),
        in_specs=in_specs,
        out_specs=out_specs,
        compiler_params=pltpu.CompilerParams(dimension_semantics=("arbitrary",)),
    )(*inputs)
    if not isinstance(outs, (list, tuple)):
        outs = (outs,)
    return dict(zip(dst_list, outs))


# ----------------------------------------------------------------------------
# Edge decoder: both Linears + ReLU fused; H->1 projection as VPU mul + reduce
# ----------------------------------------------------------------------------
def _edge_decoder_kernel(z_ref, w1_ref, b1_ref, w2_ref, b2_ref, o_ref):
    h = jnp.dot(z_ref[...], w1_ref[...], preferred_element_type=jnp.float32)
    h = jnp.maximum(h + b1_ref[...], 0.0)
    # final Linear(H, 1): elementwise multiply + lane reduction (no 1-col MXU pass)
    o = jnp.sum(h * w2_ref[...], axis=-1, keepdims=True) + b2_ref[...]
    o_ref[...] = o


def pallas_edge_decoder(z, p):
    # TODO(synk): for thousands of label edges, fuse relations into one call
    # and tile E ("parallel") with a lane-dense [1, E] output layout.
    E, H2 = z.shape
    H = p['w1'].shape[1]
    return pl.pallas_call(
        _edge_decoder_kernel,
        out_shape=jax.ShapeDtypeStruct((E, 1), jnp.float32),
        grid=(1,),
        in_specs=[
            pl.BlockSpec((E, H2), _zmap2),
            pl.BlockSpec((H2, H), _zmap2),
            pl.BlockSpec((1, H), _zmap2),
            pl.BlockSpec((1, H), _zmap2),
            pl.BlockSpec((1, 1), _zmap2),
        ],
        out_specs=pl.BlockSpec((E, 1), _zmap2),
        compiler_params=pltpu.CompilerParams(dimension_semantics=("arbitrary",)),
    )(z, p['w1'], p['b1'], p['w2r'], p['b2'])


def edge_decoder_forward(dec_params, z_dict, edge_label_index_dict):
    out = {}
    for key, eli in edge_label_index_dict.items():
        src, _, dst = key
        row, col = eli[0], eli[1]
        # TODO(synk): row/col node gathers stay in XLA (tiny, data-dependent).
        z = jnp.concatenate([z_dict[src][row], z_dict[dst][col]], axis=-1)
        out[key] = pallas_edge_decoder(z.astype(jnp.bfloat16),
                                       dec_params[src + '_' + dst])
    return out


# ----------------------------------------------------------------------------
# PretrainGNN forward
# ----------------------------------------------------------------------------
def pretrain_gnn_forward(params, x_dict, edge_index_dict, edge_label_index_dict,
                         smiles_tokens):
    # PyTorch loops the feat_encoder in 32-sequence chunks purely to bound
    # device memory; the batch-grid conv kernels are semantically identical.
    feat = cnn_forward(params['cnn'], smiles_tokens)

    h = hetero_sage_layer(x_dict, edge_index_dict, params['conv1'], relu=True)
    z = hetero_sage_layer(h, edge_index_dict, params['conv2'], relu=False)
    z = dict(z)
    z['drug'] = z['drug'] + feat
    return z, edge_decoder_forward(params['decoder'], z, edge_label_index_dict)


# ----------------------------------------------------------------------------
# Deterministic parameter init (synthetic; shapes follow the PyTorch module,
# pre-cast / pre-padded / pre-permuted once for the kernels)
# ----------------------------------------------------------------------------
def init_params(key, hidden, feat_dims, edge_types):
    keys = iter(jax.random.split(key, 64))

    def w(shape, scale=0.05):
        return scale * jax.random.normal(next(keys), shape, jnp.float32)

    D = hidden
    # CNN (encoding='drug'): Embedding(65, D, padding_idx=0), Conv1d(D->40,k4),
    # Conv1d(40->80,k6), Conv1d(80->160,k8), Linear(13600, D)
    emb = w((65, D)).at[0].set(0.0)                      # padding_idx=0 row zero
    cnn = {'embedding': emb.astype(jnp.bfloat16)}

    in_pads = (D, 128, 128)                              # conv1 input = embedding dim
    in_true = (D, 40, 80)
    for (name, cout, cout_p, k, _), cin, cin_p in zip(_CONV_GEOM, in_true, in_pads):
        wt = w((cout, cin, k))                           # PyTorch Conv1d layout
        wt = jnp.pad(wt, ((0, cout_p - cout), (0, cin_p - cin), (0, 0)))
        # channels-last, tap-major rows: w2d[k*cin_p + ci, co] = wt[co, ci, k]
        w2d = wt.transpose(2, 1, 0).reshape(k * cin_p, cout_p)
        bias = jnp.pad(w((1, cout)), ((0, 0), (0, cout_p - cout)))
        cnn[name] = {'w': w2d.astype(jnp.bfloat16), 'b': bias}

    # fc: Linear(13600, D); torch rows indexed channel-major (c*85 + l).
    # Fold the channels-last flatten, the channel padding (160->256) and the
    # length padding (85->88) into the weight rows (extra rows are zero).
    fc_t = w((_FC_C_VALID * _FC_L_VALID, D))             # 13600 x D, torch order
    fc_r = fc_t.reshape(_FC_C_VALID, _FC_L_VALID, D).transpose(1, 0, 2)
    fc_r = jnp.pad(fc_r, ((0, _FC_L_PAD - _FC_L_VALID),
                          (0, _FC_C_PAD - _FC_C_VALID), (0, 0)))
    cnn['fc'] = {'w': fc_r.reshape(_FC_L_PAD * _FC_C_PAD, D).astype(jnp.bfloat16),
                 'b': w((1, D))}

    conv1, conv2, decoder = {}, {}, {}
    for et in edge_types:
        src, _, dst = et
        conv1[et] = {'wl': w((feat_dims[src], D)).astype(jnp.bfloat16),
                     'bl': w((1, D)),
                     'wr': w((feat_dims[dst], D)).astype(jnp.bfloat16)}
        conv2[et] = {'wl': w((D, D)).astype(jnp.bfloat16),
                     'bl': w((1, D)),
                     'wr': w((D, D)).astype(jnp.bfloat16)}
        # decoder second Linear stored as a row vector for VPU mul + lane reduce
        decoder[src + '_' + dst] = {'w1': w((2 * D, D)).astype(jnp.bfloat16),
                                    'b1': w((1, D)),
                                    'w2r': w((D, 1)).reshape(1, D),
                                    'b2': w((1, 1))}
    return {'cnn': cnn, 'conv1': conv1, 'conv2': conv2, 'decoder': decoder}


if __name__ == "__main__":
    key = jax.random.PRNGKey(0)
    hidden = 32
    n_drug, n_protein = 6, 5
    feat_dims = {'drug': 16, 'protein': 24}
    edge_types = (('drug', 'interacts', 'protein'),
                  ('protein', 'rev_interacts', 'drug'))

    k_p, k_x1, k_x2, k_tok, k_e1, k_e2, k_l1, k_l2 = jax.random.split(key, 8)
    params = init_params(k_p, hidden, feat_dims, edge_types)

    x_dict = {
        'drug': jax.random.normal(k_x1, (n_drug, feat_dims['drug']), jnp.float32),
        'protein': jax.random.normal(k_x2, (n_protein, feat_dims['protein']), jnp.float32),
    }
    # SMILES token sequences (length 100 so the fc input dim matches cnn_dim=13600)
    smiles_tokens = jax.random.randint(k_tok, (n_drug, SEQ_LEN), 0, 65, jnp.int32)

    def rand_edges(k, n_src, n_dst, n_edges):
        ks, kd = jax.random.split(k)
        return jnp.stack([
            jax.random.randint(ks, (n_edges,), 0, n_src, jnp.int32),
            jax.random.randint(kd, (n_edges,), 0, n_dst, jnp.int32),
        ])

    edge_index_dict = {
        edge_types[0]: rand_edges(k_e1, n_drug, n_protein, 12),
        edge_types[1]: rand_edges(k_e2, n_protein, n_drug, 12),
    }
    edge_label_index_dict = {
        edge_types[0]: rand_edges(k_l1, n_drug, n_protein, 8),
        edge_types[1]: rand_edges(k_l2, n_protein, n_drug, 8),
    }

    z_dict, scores = pretrain_gnn_forward(params, x_dict, edge_index_dict,
                                          edge_label_index_dict, smiles_tokens)
    jax.block_until_ready((z_dict, scores))
    assert z_dict['drug'].shape == (n_drug, hidden)
    assert z_dict['protein'].shape == (n_protein, hidden)
    assert scores[edge_types[0]].shape == (8, 1)
    assert all(bool(jnp.isfinite(v).all()) for v in z_dict.values())
    assert all(bool(jnp.isfinite(v).all()) for v in scores.values())
    print("KERNEL_OK")
</pallas_src>

<mosaic_0001>
module attributes {stable_mosaic.version = 11 : i64} {
  func.func @_conv1d_cl_kernel(%arg0: i32, %arg1: memref<8x107x32xbf16, #tpu.memory_space<vmem>>, %arg2: memref<128x128xbf16, #tpu.memory_space<vmem>>, %arg3: memref<1x128xf32, #tpu.memory_space<vmem>>, %arg4: memref<8x104x128xbf16, #tpu.memory_space<vmem>>) attributes {dimension_semantics = [#tpu.dimension_semantics<parallel>], iteration_bounds = array<i64: 1>, scalar_prefetch = 0 : i64, scratch_operands = 0 : i64, tpu.core_type = #tpu.core_type<tc>, window_params = [{transform_indices = @transform_0, window_bounds = array<i64: 8, 107, 32>}, {pipeline_mode = #tpu.pipeline_mode<synchronous>, transform_indices = @transform_1, window_bounds = array<i64: 128, 128>}, {pipeline_mode = #tpu.pipeline_mode<synchronous>, transform_indices = @transform_2, window_bounds = array<i64: 1, 128>}, {transform_indices = @transform_3, window_bounds = array<i64: 8, 104, 128>}]} {
    %c0 = arith.constant 0 : index
    %c0_0 = arith.constant 0 : index
    %c0_1 = arith.constant 0 : index
    %0 = vector.load %arg1[%c0, %c0_0, %c0_1] : memref<8x107x32xbf16, #tpu.memory_space<vmem>>, vector<8x107x32xbf16>
    %1 = vector.extract_strided_slice %0 {offsets = [0, 0, 0], sizes = [8, 104, 32], strides = [1, 1, 1]} : vector<8x107x32xbf16> to vector<8x104x32xbf16>
    %2 = vector.extract_strided_slice %0 {offsets = [0, 1, 0], sizes = [8, 104, 32], strides = [1, 1, 1]} : vector<8x107x32xbf16> to vector<8x104x32xbf16>
    %3 = vector.extract_strided_slice %0 {offsets = [0, 2, 0], sizes = [8, 104, 32], strides = [1, 1, 1]} : vector<8x107x32xbf16> to vector<8x104x32xbf16>
    %4 = vector.extract_strided_slice %0 {offsets = [0, 3, 0], sizes = [8, 104, 32], strides = [1, 1, 1]} : vector<8x107x32xbf16> to vector<8x104x32xbf16>
    %5 = tpu.concatenate %1, %2, %3, %4 in 2 : vector<8x104x32xbf16>, vector<8x104x32xbf16>, vector<8x104x32xbf16>, vector<8x104x32xbf16> -> vector<8x104x128xbf16>
    %6 = vector.shape_cast %5 : vector<8x104x128xbf16> to vector<832x128xbf16>
    %c0_2 = arith.constant 0 : index
    %c0_3 = arith.constant 0 : index
    %7 = vector.load %arg2[%c0_2, %c0_3] : memref<128x128xbf16, #tpu.memory_space<vmem>>, vector<128x128xbf16>
    %cst = arith.constant dense<0.000000e+00> : vector<832x128xf32>
    %8 = tpu.matmul %6, %7, %cst {dimension_numbers = #tpu.dot_dimension_numbers<[1], [0], [0], [1], [0, 0, 1, 1], [], []>} : vector<832x128xbf16>, vector<128x128xbf16>, vector<832x128xf32> -> vector<832x128xf32>
    %c0_4 = arith.constant 0 : index
    %c0_5 = arith.constant 0 : index
    %9 = vector.load %arg3[%c0_4, %c0_5] : memref<1x128xf32, #tpu.memory_space<vmem>>, vector<1x128xf32>
    %10 = vector.broadcast %9 : vector<1x128xf32> to vector<832x128xf32>
    %11 = arith.addf %8, %10 : vector<832x128xf32>
    %cst_6 = arith.constant 0.000000e+00 : f32
    %12 = vector.broadcast %cst_6 : f32 to vector<832x128xf32>
    %13 = arith.maximumf %11, %12 : vector<832x128xf32>
    %14 = vector.shape_cast %13 : vector<832x128xf32> to vector<8x104x128xf32>
    %15 = arith.truncf %14 : vector<8x104x128xf32> to vector<8x104x128xbf16>
    %c0_7 = arith.constant 0 : index
    %c0_8 = arith.constant 0 : index
    %c0_9 = arith.constant 0 : index
    %16 = vector.load %arg4[%c0_7, %c0_8, %c0_9] : memref<8x104x128xbf16, #tpu.memory_space<vmem>>, vector<8x104x128xbf16>
    tpu.vector_store %arg4[%c0_7, %c0_8, %c0_9], %15 {strides = array<i32>} : memref<8x104x128xbf16, #tpu.memory_space<vmem>>, vector<8x104x128xbf16>,
    return
  }
  func.func @transform_0(%arg0: i32) -> (i32, i32, i32) {
    %c0_i32 = arith.constant 0 : i32
    %c0_i32_0 = arith.constant 0 : i32
    %c0_i32_1 = arith.constant 0 : i32
    return %arg0, %c0_i32, %c0_i32_0 : i32, i32, i32
  }
  func.func @transform_1(%arg0: i32) -> (i32, i32) {
    %c0_i32 = arith.constant 0 : i32
    %c0_i32_0 = arith.constant 0 : i32
    %c0_i32_1 = arith.constant 0 : i32
    return %c0_i32, %c0_i32_0 : i32, i32
  }
  func.func @transform_2(%arg0: i32) -> (i32, i32) {
    %c0_i32 = arith.constant 0 : i32
    %c0_i32_0 = arith.constant 0 : i32
    %c0_i32_1 = arith.constant 0 : i32
    return %c0_i32, %c0_i32_0 : i32, i32
  }
  func.func @transform_3(%arg0: i32) -> (i32, i32, i32) {
    %c0_i32 = arith.constant 0 : i32
    %c0_i32_0 = arith.constant 0 : i32
    %c0_i32_1 = arith.constant 0 : i32
    return %arg0, %c0_i32, %c0_i32_0 : i32, i32, i32
  }
}

</mosaic_0001>

<llo_original>
// kernel: tpu_custom_call.1
$region0: #{tpu_custom_call.1}
  #allocation0 [shape = 'u32[]', space=smem, size = 0x4, offset = 0x4, fixed_abs, tag = 'smem constant byte address 0x4 - core index']
  #allocation1 [shape = 'u32[144,128]{1,0:T(1,128)}', space=vmem, size = 0x12000, scoped, tag = 'internal scratch']
  %s0 = inlined_call_operand.vmem [shape: bf16[8,107,32], index: 0, kind: input, shape index: {}]
  %s1 = inlined_call_operand.vmem [shape: bf16[128,128], index: 1, kind: input, shape index: {}]
  %s2 = inlined_call_operand.vmem [shape: f32[1,128], index: 2, kind: input, shape index: {}]
  %s3 = inlined_call_operand.hbm [shape: bf16[8,104,128], index: 3, kind: output, shape index: {}]
  %s4 = sld [smem:[#allocation0]]
  $region22: #{tpu_custom_call.1} parent=0
    _
  %s6 = ssub.s32 1, %s4
  %s7 = scalar_select 0, %s6, %s4
  $region1: #{tpu_custom_call.1} parent=0
    #allocation2 [shape = 'u8[212992]{0}', space=vmem, size = 0x34000, scoped, tag = 'output window, operand 0, single buffered']
    #allocation3 [shape = 's32[1]{0}', space=sflag, size = 0x4, scoped, tag = 'scoped memory for tpu_custom_call.1']
    %8 = vsyncpa [#allocation3], 0
    // Predicated region
    $region2: #{tpu_custom_call.1} parent=1 // pred_check
      _
    $region3: #{tpu_custom_call.1} parent=1 // pred_check_branch
      %10 = sbr.rel (0) target = $region5
    $region4: #{tpu_custom_call.1} parent=1 // pred_region
      _
    $region5: #{tpu_custom_call.1} parent=1 // pred_fallthru
      _
    // Predicated region
    $region6: #{tpu_custom_call.1} parent=1 // pred_check
      _
    $region7: #{tpu_custom_call.1} parent=1 // pred_check_branch
      %12 = sbr.rel (0) target = $region9
    $region8: #{tpu_custom_call.1} parent=1 // pred_region
      _
    $region9: #{tpu_custom_call.1} parent=1 // pred_fallthru
      _
    // Predicated region
    $region10: #{tpu_custom_call.1} parent=1 // pred_check
      _
    $region11: #{tpu_custom_call.1} parent=1 // pred_check_branch
      %14 = sbr.rel (0) target = $region13
    $region12: #{tpu_custom_call.1} parent=1 // pred_region
      _
    $region13: #{tpu_custom_call.1} parent=1 // pred_fallthru
      _
    %v16 = vld [vmem:[%s0] sm:$0xf]
    %v17 = vld [vmem:[%s0 + $0x4] sm:$0xf]
    %v18 = vld [vmem:[%s0 + $0x8] sm:$0xf]
    %v19 = vld [vmem:[%s0 + $0xc] sm:$0xf]
    %v20 = vld [vmem:[%s0 + $0x10] sm:$0xf]
    %v21 = vld [vmem:[%s0 + $0x14] sm:$0xf]
    %v22 = vld [vmem:[%s0 + $0x18] sm:$0xf]
    %v23 = vld [vmem:[%s0 + $0x1c] sm:$0xf]
    %v24 = vld [vmem:[%s0 + $0x20] sm:$0xf]
    %v25 = vld [vmem:[%s0 + $0x24] sm:$0xf]
    %v26 = vld [vmem:[%s0 + $0x28] sm:$0xf]
    %v27 = vld [vmem:[%s0 + $0x2c] sm:$0xf]
    %v28 = vld [vmem:[%s0 + $0x30] sm:$0xf]
    %v29 = vld [vmem:[%s0 + $0x34] sm:$0x3]
    %v30 = vld [vmem:[%s0 + $0x38] sm:$0xf]
    %v31 = vld [vmem:[%s0 + $0x3c] sm:$0xf]
    %v32 = vld [vmem:[%s0 + $0x40] sm:$0xf]
    %v33 = vld [vmem:[%s0 + $0x44] sm:$0xf]
    %v34 = vld [vmem:[%s0 + $0x48] sm:$0xf]
    %v35 = vld [vmem:[%s0 + $0x4c] sm:$0xf]
    %v36 = vld [vmem:[%s0 + $0x50] sm:$0xf]
    %v37 = vld [vmem:[%s0 + $0x54] sm:$0xf]
    %v38 = vld [vmem:[%s0 + $0x58] sm:$0xf]
    %v39 = vld [vmem:[%s0 + $0x5c] sm:$0xf]
    %v40 = vld [vmem:[%s0 + $0x60] sm:$0xf]
    %v41 = vld [vmem:[%s0 + $0x64] sm:$0xf]
    %v42 = vld [vmem:[%s0 + $0x68] sm:$0xf]
    %v43 = vld [vmem:[%s0 + $0x6c] sm:$0x3]
    %v44 = vld [vmem:[%s0 + $0x70] sm:$0xf]
    %v45 = vld [vmem:[%s0 + $0x74] sm:$0xf]
    %v46 = vld [vmem:[%s0 + $0x78] sm:$0xf]
    %v47 = vld [vmem:[%s0 + $0x7c] sm:$0xf]
    %v48 = vld [vmem:[%s0 + $0x80] sm:$0xf]
    %v49 = vld [vmem:[%s0 + $0x84] sm:$0xf]
    %v50 = vld [vmem:[%s0 + $0x88] sm:$0xf]
    %v51 = vld [vmem:[%s0 + $0x8c] sm:$0xf]
    %v52 = vld [vmem:[%s0 + $0x90] sm:$0xf]
    %v53 = vld [vmem:[%s0 + $0x94] sm:$0xf]
    %v54 = vld [vmem:[%s0 + $0x98] sm:$0xf]
    %v55 = vld [vmem:[%s0 + $0x9c] sm:$0xf]
    %v56 = vld [vmem:[%s0 + $0xa0] sm:$0xf]
    %v57 = vld [vmem:[%s0 + $0xa4] sm:$0x3]
    %v58 = vld [vmem:[%s0 + $0xa8] sm:$0xf]
    %v59 = vld [vmem:[%s0 + $0xac] sm:$0xf]
    %v60 = vld [vmem:[%s0 + $0xb0] sm:$0xf]
    %v61 = vld [vmem:[%s0 + $0xb4] sm:$0xf]
    %v62 = vld [vmem:[%s0 + $0xb8] sm:$0xf]
    %v63 = vld [vmem:[%s0 + $0xbc] sm:$0xf]
    %v64 = vld [vmem:[%s0 + $0xc0] sm:$0xf]
    %v65 = vld [vmem:[%s0 + $0xc4] sm:$0xf]
    %v66 = vld [vmem:[%s0 + $0xc8] sm:$0xf]
    %v67 = vld [vmem:[%s0 + $0xcc] sm:$0xf]
    %v68 = vld [vmem:[%s0 + $0xd0] sm:$0xf]
    %v69 = vld [vmem:[%s0 + $0xd4] sm:$0xf]
    %v70 = vld [vmem:[%s0 + $0xd8] sm:$0xf]
    %v71 = vld [vmem:[%s0 + $0xdc] sm:$0x3]
    %v72 = vld [vmem:[%s0 + $0xe0] sm:$0xf]
    %v73 = vld [vmem:[%s0 + $0xe4] sm:$0xf]
    %v74 = vld [vmem:[%s0 + $0xe8] sm:$0xf]
    %v75 = vld [vmem:[%s0 + $0xec] sm:$0xf]
    %v76 = vld [vmem:[%s0 + $0xf0] sm:$0xf]
    %v77 = vld [vmem:[%s0 + $0xf4] sm:$0xf]
    %v78 = vld [vmem:[%s0 + $0xf8] sm:$0xf]
    %v79 = vld [vmem:[%s0 + $0xfc] sm:$0xf]
    %v80 = vld [vmem:[%s0 + $0x100] sm:$0xf]
    %v81 = vld [vmem:[%s0 + $0x104] sm:$0xf]
    %v82 = vld [vmem:[%s0 + $0x108] sm:$0xf]
    %v83 = vld [vmem:[%s0 + $0x10c] sm:$0xf]
    %v84 = vld [vmem:[%s0 + $0x110] sm:$0xf]
    %v85 = vld [vmem:[%s0 + $0x114] sm:$0x3]
    %v86 = vld [vmem:[%s0 + $0x118] sm:$0xf]
    %v87 = vld [vmem:[%s0 + $0x11c] sm:$0xf]
    %v88 = vld [vmem:[%s0 + $0x120] sm:$0xf]
    %v89 = vld [vmem:[%s0 + $0x124] sm:$0xf]
    %v90 = vld [vmem:[%s0 + $0x128] sm:$0xf]
    %v91 = vld [vmem:[%s0 + $0x12c] sm:$0xf]
    %v92 = vld [vmem:[%s0 + $0x130] sm:$0xf]
    %v93 = vld [vmem:[%s0 + $0x134] sm:$0xf]
    %v94 = vld [vmem:[%s0 + $0x138] sm:$0xf]
    %v95 = vld [vmem:[%s0 + $0x13c] sm:$0xf]
    %v96 = vld [vmem:[%s0 + $0x140] sm:$0xf]
    %v97 = vld [vmem:[%s0 + $0x144] sm:$0xf]
    %v98 = vld [vmem:[%s0 + $0x148] sm:$0xf]
    %v99 = vld [vmem:[%s0 + $0x14c] sm:$0x3]
    %v100 = vld [vmem:[%s0 + $0x150] sm:$0xf]
    %v101 = vld [vmem:[%s0 + $0x154] sm:$0xf]
    %v102 = vld [vmem:[%s0 + $0x158] sm:$0xf]
    %v103 = vld [vmem:[%s0 + $0x15c] sm:$0xf]
    %v104 = vld [vmem:[%s0 + $0x160] sm:$0xf]
    %v105 = vld [vmem:[%s0 + $0x164] sm:$0xf]
    %v106 = vld [vmem:[%s0 + $0x168] sm:$0xf]
    %v107 = vld [vmem:[%s0 + $0x16c] sm:$0xf]
    %v108 = vld [vmem:[%s0 + $0x170] sm:$0xf]
    %v109 = vld [vmem:[%s0 + $0x174] sm:$0xf]
    %v110 = vld [vmem:[%s0 + $0x178] sm:$0xf]
    %v111 = vld [vmem:[%s0 + $0x17c] sm:$0xf]
    %v112 = vld [vmem:[%s0 + $0x180] sm:$0xf]
    %v113 = vld [vmem:[%s0 + $0x184] sm:$0x3]
    %v114 = vld [vmem:[%s0 + $0x188] sm:$0xf]
    %v115 = vld [vmem:[%s0 + $0x18c] sm:$0xf]
    %v116 = vld [vmem:[%s0 + $0x190] sm:$0xf]
    %v117 = vld [vmem:[%s0 + $0x194] sm:$0xf]
    %v118 = vld [vmem:[%s0 + $0x198] sm:$0xf]
    %v119 = vld [vmem:[%s0 + $0x19c] sm:$0xf]
    %v120 = vld [vmem:[%s0 + $0x1a0] sm:$0xf]
    %v121 = vld [vmem:[%s0 + $0x1a4] sm:$0xf]
    %v122 = vld [vmem:[%s0 + $0x1a8] sm:$0xf]
    %v123 = vld [vmem:[%s0 + $0x1ac] sm:$0xf]
    %v124 = vld [vmem:[%s0 + $0x1b0] sm:$0xf]
    %v125 = vld [vmem:[%s0 + $0x1b4] sm:$0xf]
    %v126 = vld [vmem:[%s0 + $0x1b8] sm:$0xf]
    %v127 = vld [vmem:[%s0 + $0x1bc] sm:$0x3]
    %v232 = vunpack.c.l.b16 %v16
    %v233 = vunpack.c.l.b16 %v17
    %v234 = vunpack.c.l.b16 %v18
    %v235 = vunpack.c.l.b16 %v19
    %v236 = vunpack.c.l.b16 %v20
    %v237 = vunpack.c.l.b16 %v21
    %v238 = vunpack.c.l.b16 %v22
    %v239 = vunpack.c.l.b16 %v23
    %v240 = vunpack.c.l.b16 %v24
    %v241 = vunpack.c.l.b16 %v25
    %v242 = vunpack.c.l.b16 %v26
    %v243 = vunpack.c.l.b16 %v27
    %v244 = vunpack.c.l.b16 %v28
    %v245 = vunpack.c.l.b16 %v30
    %v246 = vunpack.c.l.b16 %v31
    %v247 = vunpack.c.l.b16 %v32
    %v248 = vunpack.c.l.b16 %v33
    %v249 = vunpack.c.l.b16 %v34
    %v250 = vunpack.c.l.b16 %v35
    %v251 = vunpack.c.l.b16 %v36
    %v252 = vunpack.c.l.b16 %v37
    %v253 = vunpack.c.l.b16 %v38
    %v254 = vunpack.c.l.b16 %v39
    %v255 = vunpack.c.l.b16 %v40
    %v256 = vunpack.c.l.b16 %v41
    %v257 = vunpack.c.l.b16 %v42
    %v258 = vunpack.c.l.b16 %v44
    %v259 = vunpack.c.l.b16 %v45
    %v260 = vunpack.c.l.b16 %v46
    %v261 = vunpack.c.l.b16 %v47
    %v262 = vunpack.c.l.b16 %v48
    %v263 = vunpack.c.l.b16 %v49
    %v264 = vunpack.c.l.b16 %v50
    %v265 = vunpack.c.l.b16 %v51
    %v266 = vunpack.c.l.b16 %v52
    %v267 = vunpack.c.l.b16 %v53
    %v268 = vunpack.c.l.b16 %v54
    %v269 = vunpack.c.l.b16 %v55
    %v270 = vunpack.c.l.b16 %v56
    %v271 = vunpack.c.l.b16 %v58
    %v272 = vunpack.c.l.b16 %v59
    %v273 = vunpack.c.l.b16 %v60
    %v274 = vunpack.c.l.b16 %v61
    %v275 = vunpack.c.l.b16 %v62
    %v276 = vunpack.c.l.b16 %v63
    %v277 = vunpack.c.l.b16 %v64
    %v278 = vunpack.c.l.b16 %v65
    %v279 = vunpack.c.l.b16 %v66
    %v280 = vunpack.c.l.b16 %v67
    %v281 = vunpack.c.l.b16 %v68
    %v282 = vunpack.c.l.b16 %v69
    %v283 = vunpack.c.l.b16 %v70
    %v284 = vunpack.c.l.b16 %v72
    %v285 = vunpack.c.l.b16 %v73
    %v286 = vunpack.c.l.b16 %v74
    %v287 = vunpack.c.l.b16 %v75
    %v288 = vunpack.c.l.b16 %v76
    %v289 = vunpack.c.l.b16 %v77
    %v290 = vunpack.c.l.b16 %v78
    %v291 = vunpack.c.l.b16 %v79
    %v292 = vunpack.c.l.b16 %v80
    %v293 = vunpack.c.l.b16 %v81
    %v294 = vunpack.c.l.b16 %v82
    %v295 = vunpack.c.l.b16 %v83
    %v296 = vunpack.c.l.b16 %v84
    %v297 = vunpack.c.l.b16 %v86
    %v298 = vunpack.c.l.b16 %v87
    %v299 = vunpack.c.l.b16 %v88
    %v300 = vunpack.c.l.b16 %v89
    %v301 = vunpack.c.l.b16 %v90
    %v302 = vunpack.c.l.b16 %v91
    %v303 = vunpack.c.l.b16 %v92
    %v304 = vunpack.c.l.b16 %v93
    %v305 = vunpack.c.l.b16 %v94
    %v306 = vunpack.c.l.b16 %v95
    %v307 = vunpack.c.l.b16 %v96
    %v308 = vunpack.c.l.b16 %v97
    %v309 = vunpack.c.l.b16 %v98
    %v310 = vunpack.c.l.b16 %v100
    %v311 = vunpack.c.l.b16 %v101
    %v312 = vunpack.c.l.b16 %v102
    %v313 = vunpack.c.l.b16 %v103
    %v314 = vunpack.c.l.b16 %v104
    %v315 = vunpack.c.l.b16 %v105
    %v316 = vunpack.c.l.b16 %v106
    %v317 = vunpack.c.l.b16 %v107
    %v318 = vunpack.c.l.b16 %v108
    %v319 = vunpack.c.l.b16 %v109
    %v320 = vunpack.c.l.b16 %v110
    %v321 = vunpack.c.l.b16 %v111
    %v322 = vunpack.c.l.b16 %v112
    %v323 = vunpack.c.l.b16 %v114
    %v324 = vunpack.c.l.b16 %v115
    %v325 = vunpack.c.l.b16 %v116
    %v326 = vunpack.c.l.b16 %v117
    %v327 = vunpack.c.l.b16 %v118
    %v328 = vunpack.c.l.b16 %v119
    %v329 = vunpack.c.l.b16 %v120
    %v330 = vunpack.c.l.b16 %v121
    %v331 = vunpack.c.l.b16 %v122
    %v332 = vunpack.c.l.b16 %v123
    %v333 = vunpack.c.l.b16 %v124
    %v334 = vunpack.c.l.b16 %v125
    %v335 = vunpack.c.l.b16 %v126
    %v336 = vpack.c.b16 %v233, %v232
    %v337 = vpack.c.b16 %v235, %v234
    %v338 = vpack.c.b16 %v237, %v236
    %v339 = vpack.c.b16 %v239, %v238
    %v340 = vpack.c.b16 %v241, %v240
    %v341 = vpack.c.b16 %v243, %v242
    %v342 = vpack.c.b16 %v244, %v244
    %v343 = vpack.c.b16 %v246, %v245
    %v344 = vpack.c.b16 %v248, %v247
    %v345 = vpack.c.b16 %v250, %v249
    %v346 = vpack.c.b16 %v252, %v251
    %v347 = vpack.c.b16 %v254, %v253
    %v348 = vpack.c.b16 %v256, %v255
    %v349 = vpack.c.b16 %v257, %v257
    %v350 = vpack.c.b16 %v259, %v258
    %v351 = vpack.c.b16 %v261, %v260
    %v352 = vpack.c.b16 %v263, %v262
    %v353 = vpack.c.b16 %v265, %v264
    %v354 = vpack.c.b16 %v267, %v266
    %v355 = vpack.c.b16 %v269, %v268
    %v356 = vpack.c.b16 %v270, %v270
    %v357 = vpack.c.b16 %v272, %v271
    %v358 = vpack.c.b16 %v274, %v273
    %v359 = vpack.c.b16 %v276, %v275
    %v360 = vpack.c.b16 %v278, %v277
    %v361 = vpack.c.b16 %v280, %v279
    %v362 = vpack.c.b16 %v282, %v281
    %v363 = vpack.c.b16 %v283, %v283
    %v364 = vpack.c.b16 %v285, %v284
    %v365 = vpack.c.b16 %v287, %v286
    %v366 = vpack.c.b16 %v289, %v288
    %v367 = vpack.c.b16 %v291, %v290
    %v368 = vpack.c.b16 %v293, %v292
    %v369 = vpack.c.b16 %v295, %v294
    %v370 = vpack.c.b16 %v296, %v296
    %v371 = vpack.c.b16 %v298, %v297
    %v372 = vpack.c.b16 %v300, %v299
    %v373 = vpack.c.b16 %v302, %v301
    %v374 = vpack.c.b16 %v304, %v303
    %v375 = vpack.c.b16 %v306, %v305
    %v376 = vpack.c.b16 %v308, %v307
    %v377 = vpack.c.b16 %v309, %v309
    %v378 = vpack.c.b16 %v311, %v310
    %v379 = vpack.c.b16 %v313, %v312
    %v380 = vpack.c.b16 %v315, %v314
    %v381 = vpack.c.b16 %v317, %v316
    %v382 = vpack.c.b16 %v319, %v318
    %v383 = vpack.c.b16 %v321, %v320
    %v384 = vpack.c.b16 %v322, %v322
    %v385 = vpack.c.b16 %v324, %v323
    %v386 = vpack.c.b16 %v326, %v325
    %v387 = vpack.c.b16 %v328, %v327
    %v388 = vpack.c.b16 %v330, %v329
    %v389 = vpack.c.b16 %v332, %v331
    %v390 = vpack.c.b16 %v334, %v333
    %v391 = vpack.c.b16 %v335, %v335
    %v400 = vunpack.c.l.b16 %v29
    %v401 = vunpack.c.l.b16 %v43
    %v402 = vunpack.c.l.b16 %v57
    %v403 = vunpack.c.l.b16 %v71
    %v404 = vunpack.c.l.b16 %v85
    %v405 = vunpack.c.l.b16 %v99
    %v406 = vunpack.c.l.b16 %v113
    %v407 = vunpack.c.l.b16 %v127
    %v408 = vpack.c.b16 %v400, %v244
    %v409 = vpack.c.b16 %v401, %v257
    %v410 = vpack.c.b16 %v402, %v270
    %v411 = vpack.c.b16 %v403, %v283
    %v412 = vpack.c.b16 %v404, %v296
    %v413 = vpack.c.b16 %v405, %v309
    %v414 = vpack.c.b16 %v406, %v322
    %v415 = vpack.c.b16 %v407, %v335
    %vm416 = vsmask.f32 7424
    %v418 = vshrl.u32 %v336, 16
    %v420 = vshll.u32 %v336, 16
    %v422 = vrot.slane %v420, 1
    %v423 = vor.u32 %v418, %v422
    %v425 = vshll.u32 %v337, 16
    %v427 = vrot.slane %v425, 1
    %v428 = vsel %vm416, %v423, %v427
    %v429 = vshrl.u32 %v337, 16
    %v431 = vor.u32 %v429, %v427
    %v433 = vshll.u32 %v338, 16
    %v435 = vrot.slane %v433, 1
    %v436 = vsel %vm416, %v431, %v435
    %v437 = vshrl.u32 %v338, 16
    %v439 = vor.u32 %v437, %v435
    %v441 = vshll.u32 %v339, 16
    %v443 = vrot.slane %v441, 1
    %v444 = vsel %vm416, %v439, %v443
    %v445 = vshrl.u32 %v339, 16
    %v447 = vor.u32 %v445, %v443
    %v449 = vshll.u32 %v340, 16
    %v451 = vrot.slane %v449, 1
    %v452 = vsel %vm416, %v447, %v451
    %v453 = vshrl.u32 %v340, 16
    %v455 = vor.u32 %v453, %v451
    %v457 = vshll.u32 %v341, 16
    %v459 = vrot.slane %v457, 1
    %v460 = vsel %vm416, %v455, %v459
    %v461 = vshrl.u32 %v341, 16
    %v463 = vor.u32 %v461, %v459
    %v465 = vshll.u32 %v408, 16
    %v467 = vrot.slane %v465, 1
    %v468 = vsel %vm416, %v463, %v467
    %v469 = vshrl.u32 %v408, 16
    %v471 = vor.u32 %v469, %v467
    %v473 = vshrl.u32 %v343, 16
    %v475 = vshll.u32 %v343, 16
    %v477 = vrot.slane %v475, 1
    %v478 = vor.u32 %v473, %v477
    %v480 = vshll.u32 %v344, 16
    %v482 = vrot.slane %v480, 1
    %v483 = vsel %vm416, %v478, %v482
    %v484 = vshrl.u32 %v344, 16
    %v486 = vor.u32 %v484, %v482
    %v488 = vshll.u32 %v345, 16
    %v490 = vrot.slane %v488, 1
    %v491 = vsel %vm416, %v486, %v490
    %v492 = vshrl.u32 %v345, 16
    %v494 = vor.u32 %v492, %v490
    %v496 = vshll.u32 %v346, 16
    %v498 = vrot.slane %v496, 1
    %v499 = vsel %vm416, %v494, %v498
    %v500 = vshrl.u32 %v346, 16
    %v502 = vor.u32 %v500, %v498
    %v504 = vshll.u32 %v347, 16
    %v506 = vrot.slane %v504, 1
    %v507 = vsel %vm416, %v502, %v506
    %v508 = vshrl.u32 %v347, 16
    %v510 = vor.u32 %v508, %v506
    %v512 = vshll.u32 %v348, 16
    %v514 = vrot.slane %v512, 1
    %v515 = vsel %vm416, %v510, %v514
    %v516 = vshrl.u32 %v348, 16
    %v518 = vor.u32 %v516, %v514
    %v520 = vshll.u32 %v409, 16
    %v522 = vrot.slane %v520, 1
    %v523 = vsel %vm416, %v518, %v522
    %v524 = vshrl.u32 %v409, 16
    %v526 = vor.u32 %v524, %v522
    %v528 = vshrl.u32 %v350, 16
    %v530 = vshll.u32 %v350, 16
    %v532 = vrot.slane %v530, 1
    %v533 = vor.u32 %v528, %v532
    %v535 = vshll.u32 %v351, 16
    %v537 = vrot.slane %v535, 1
    %v538 = vsel %vm416, %v533, %v537
    %v539 = vshrl.u32 %v351, 16
    %v541 = vor.u32 %v539, %v537
    %v543 = vshll.u32 %v352, 16
    %v545 = vrot.slane %v543, 1
    %v546 = vsel %vm416, %v541, %v545
    %v547 = vshrl.u32 %v352, 16
    %v549 = vor.u32 %v547, %v545
    %v551 = vshll.u32 %v353, 16
    %v553 = vrot.slane %v551, 1
    %v554 = vsel %vm416, %v549, %v553
    %v555 = vshrl.u32 %v353, 16
    %v557 = vor.u32 %v555, %v553
    %v559 = vshll.u32 %v354, 16
    %v561 = vrot.slane %v559, 1
    %v562 = vsel %vm416, %v557, %v561
    %v563 = vshrl.u32 %v354, 16
    %v565 = vor.u32 %v563, %v561
    %v567 = vshll.u32 %v355, 16
    %v569 = vrot.slane %v567, 1
    %v570 = vsel %vm416, %v565, %v569
    %v571 = vshrl.u32 %v355, 16
    %v573 = vor.u32 %v571, %v569
    %v575 = vshll.u32 %v410, 16
    %v577 = vrot.slane %v575, 1
    %v578 = vsel %vm416, %v573, %v577
    %v579 = vshrl.u32 %v410, 16
    %v581 = vor.u32 %v579, %v577
    %v583 = vshrl.u32 %v357, 16
    %v585 = vshll.u32 %v357, 16
    %v587 = vrot.slane %v585, 1
    %v588 = vor.u32 %v583, %v587
    %v590 = vshll.u32 %v358, 16
    %v592 = vrot.slane %v590, 1
    %v593 = vsel %vm416, %v588, %v592
    %v594 = vshrl.u32 %v358, 16
    %v596 = vor.u32 %v594, %v592
    %v598 = vshll.u32 %v359, 16
    %v600 = vrot.slane %v598, 1
    %v601 = vsel %vm416, %v596, %v600
    %v602 = vshrl.u32 %v359, 16
    %v604 = vor.u32 %v602, %v600
    %v606 = vshll.u32 %v360, 16
    %v608 = vrot.slane %v606, 1
    %v609 = vsel %vm416, %v604, %v608
    %v610 = vshrl.u32 %v360, 16
    %v612 = vor.u32 %v610, %v608
    %v614 = vshll.u32 %v361, 16
    %v616 = vrot.slane %v614, 1
    %v617 = vsel %vm416, %v612, %v616
    %v618 = vshrl.u32 %v361, 16
    %v620 = vor.u32 %v618, %v616
    %v622 = vshll.u32 %v362, 16
    %v624 = vrot.slane %v622, 1
    %v625 = vsel %vm416, %v620, %v624
    %v626 = vshrl.u32 %v362, 16
    %v628 = vor.u32 %v626, %v624
    %v630 = vshll.u32 %v411, 16
    %v632 = vrot.slane %v630, 1
    %v633 = vsel %vm416, %v628, %v632
    %v634 = vshrl.u32 %v411, 16
    %v636 = vor.u32 %v634, %v632
    %v638 = vshrl.u32 %v364, 16
    %v640 = vshll.u32 %v364, 16
    %v642 = vrot.slane %v640, 1
    %v643 = vor.u32 %v638, %v642
    %v645 = vshll.u32 %v365, 16
    %v647 = vrot.slane %v645, 1
    %v648 = vsel %vm416, %v643, %v647
    %v649 = vshrl.u32 %v365, 16
    %v651 = vor.u32 %v649, %v647
    %v653 = vshll.u32 %v366, 16
    %v655 = vrot.slane %v653, 1
    %v656 = vsel %vm416, %v651, %v655
    %v657 = vshrl.u32 %v366, 16
    %v659 = vor.u32 %v657, %v655
    %v661 = vshll.u32 %v367, 16
    %v663 = vrot.slane %v661, 1
    %v664 = vsel %vm416, %v659, %v663
    %v665 = vshrl.u32 %v367, 16
    %v667 = vor.u32 %v665, %v663
    %v669 = vshll.u32 %v368, 16
    %v671 = vrot.slane %v669, 1
    %v672 = vsel %vm416, %v667, %v671
    %v673 = vshrl.u32 %v368, 16
    %v675 = vor.u32 %v673, %v671
    %v677 = vshll.u32 %v369, 16
    %v679 = vrot.slane %v677, 1
    %v680 = vsel %vm416, %v675, %v679
    %v681 = vshrl.u32 %v369, 16
    %v683 = vor.u32 %v681, %v679
    %v685 = vshll.u32 %v412, 16
    %v687 = vrot.slane %v685, 1
    %v688 = vsel %vm416, %v683, %v687
    %v689 = vshrl.u32 %v412, 16
    %v691 = vor.u32 %v689, %v687
    %v693 = vshrl.u32 %v371, 16
    %v695 = vshll.u32 %v371, 16
    %v697 = vrot.slane %v695, 1
    %v698 = vor.u32 %v693, %v697
    %v700 = vshll.u32 %v372, 16
    %v702 = vrot.slane %v700, 1
    %v703 = vsel %vm416, %v698, %v702
    %v704 = vshrl.u32 %v372, 16
    %v706 = vor.u32 %v704, %v702
    %v708 = vshll.u32 %v373, 16
    %v710 = vrot.slane %v708, 1
    %v711 = vsel %vm416, %v706, %v710
    %v712 = vshrl.u32 %v373, 16
    %v714 = vor.u32 %v712, %v710
    %v716 = vshll.u32 %v374, 16
    %v718 = vrot.slane %v716, 1
    %v719 = vsel %vm416, %v714, %v718
    %v720 = vshrl.u32 %v374, 16
    %v722 = vor.u32 %v720, %v718
    %v724 = vshll.u32 %v375, 16
    %v726 = vrot.slane %v724, 1
    %v727 = vsel %vm416, %v722, %v726
    %v728 = vshrl.u32 %v375, 16
    %v730 = vor.u32 %v728, %v726
    %v732 = vshll.u32 %v376, 16
    %v734 = vrot.slane %v732, 1
    %v735 = vsel %vm416, %v730, %v734
    %v736 = vshrl.u32 %v376, 16
    %v738 = vor.u32 %v736, %v734
    %v740 = vshll.u32 %v413, 16
    %v742 = vrot.slane %v740, 1
    %v743 = vsel %vm416, %v738, %v742
    %v744 = vshrl.u32 %v413, 16
    %v746 = vor.u32 %v744, %v742
    %v748 = vshrl.u32 %v378, 16
    %v750 = vshll.u32 %v378, 16
    %v752 = vrot.slane %v750, 1
    %v753 = vor.u32 %v748, %v752
    %v755 = vshll.u32 %v379, 16
    %v757 = vrot.slane %v755, 1
    %v758 = vsel %vm416, %v753, %v757
    %v759 = vshrl.u32 %v379, 16
    %v761 = vor.u32 %v759, %v757
    %v763 = vshll.u32 %v380, 16
    %v765 = vrot.slane %v763, 1
    %v766 = vsel %vm416, %v761, %v765
    %v767 = vshrl.u32 %v380, 16
    %v769 = vor.u32 %v767, %v765
    %v771 = vshll.u32 %v381, 16
    %v773 = vrot.slane %v771, 1
    %v774 = vsel %vm416, %v769, %v773
    %v775 = vshrl.u32 %v381, 16
    %v777 = vor.u32 %v775, %v773
    %v779 = vshll.u32 %v382, 16
    %v781 = vrot.slane %v779, 1
    %v782 = vsel %vm416, %v777, %v781
    %v783 = vshrl.u32 %v382, 16
    %v785 = vor.u32 %v783, %v781
    %v787 = vshll.u32 %v383, 16
    %v789 = vrot.slane %v787, 1
    %v790 = vsel %vm416, %v785, %v789
    %v791 = vshrl.u32 %v383, 16
    %v793 = vor.u32 %v791, %v789
    %v795 = vshll.u32 %v414, 16
    %v797 = vrot.slane %v795, 1
    %v798 = vsel %vm416, %v793, %v797
    %v799 = vshrl.u32 %v414, 16
    %v801 = vor.u32 %v799, %v797
    %v803 = vshrl.u32 %v385, 16
    %v805 = vshll.u32 %v385, 16
    %v807 = vrot.slane %v805, 1
    %v808 = vor.u32 %v803, %v807
    %v810 = vshll.u32 %v386, 16
    %v812 = vrot.slane %v810, 1
    %v813 = vsel %vm416, %v808, %v812
    %v814 = vshrl.u32 %v386, 16
    %v816 = vor.u32 %v814, %v812
    %v818 = vshll.u32 %v387, 16
    %v820 = vrot.slane %v818, 1
    %v821 = vsel %vm416, %v816, %v820
    %v822 = vshrl.u32 %v387, 16
    %v824 = vor.u32 %v822, %v820
    %v826 = vshll.u32 %v388, 16
    %v828 = vrot.slane %v826, 1
    %v829 = vsel %vm416, %v824, %v828
    %v830 = vshrl.u32 %v388, 16
    %v832 = vor.u32 %v830, %v828
    %v834 = vshll.u32 %v389, 16
    %v836 = vrot.slane %v834, 1
    %v837 = vsel %vm416, %v832, %v836
    %v838 = vshrl.u32 %v389, 16
    %v840 = vor.u32 %v838, %v836
    %v842 = vshll.u32 %v390, 16
    %v844 = vrot.slane %v842, 1
    %v845 = vsel %vm416, %v840, %v844
    %v846 = vshrl.u32 %v390, 16
    %v848 = vor.u32 %v846, %v844
    %v850 = vshll.u32 %v415, 16
    %v852 = vrot.slane %v850, 1
    %v853 = vsel %vm416, %v848, %v852
    %v854 = vshrl.u32 %v415, 16
    %v856 = vor.u32 %v854, %v852
    %857 = vrot.lane.b32.xlu0 %v428, 32
    %v858 = vpop.permute.xlu0 %857
    %859 = vrot.lane.b32.xlu0 %v436, 32
    %v860 = vpop.permute.xlu0 %859
    %861 = vrot.lane.b32.xlu0 %v444, 32
    %v862 = vpop.permute.xlu0 %861
    %863 = vrot.lane.b32.xlu0 %v452, 32
    %v864 = vpop.permute.xlu0 %863
    %865 = vrot.lane.b32.xlu0 %v460, 32
    %v866 = vpop.permute.xlu0 %865
    %867 = vrot.lane.b32.xlu0 %v468, 32
    %v868 = vpop.permute.xlu0 %867
    %869 = vrot.lane.b32.xlu0 %v471, 32
    %v870 = vpop.permute.xlu0 %869
    %871 = vrot.lane.b32.xlu0 %v483, 32
    %v872 = vpop.permute.xlu0 %871
    %873 = vrot.lane.b32.xlu0 %v491, 32
    %v874 = vpop.permute.xlu0 %873
    %875 = vrot.lane.b32.xlu0 %v499, 32
    %v876 = vpop.permute.xlu0 %875
    %877 = vrot.lane.b32.xlu0 %v507, 32
    %v878 = vpop.permute.xlu0 %877
    %879 = vrot.lane.b32.xlu0 %v515, 32
    %v880 = vpop.permute.xlu0 %879
    %881 = vrot.lane.b32.xlu0 %v523, 32
    %v882 = vpop.permute.xlu0 %881
    %883 = vrot.lane.b32.xlu0 %v526, 32
    %v884 = vpop.permute.xlu0 %883
    %885 = vrot.lane.b32.xlu0 %v538, 32
    %v886 = vpop.permute.xlu0 %885
    %887 = vrot.lane.b32.xlu0 %v546, 32
    %v888 = vpop.permute.xlu0 %887
    %889 = vrot.lane.b32.xlu0 %v554, 32
    %v890 = vpop.permute.xlu0 %889
    %891 = vrot.lane.b32.xlu0 %v562, 32
    %v892 = vpop.permute.xlu0 %891
    %893 = vrot.lane.b32.xlu0 %v570, 32
    %v894 = vpop.permute.xlu0 %893
    %895 = vrot.lane.b32.xlu0 %v578, 32
    %v896 = vpop.permute.xlu0 %895
    %897 = vrot.lane.b32.xlu0 %v581, 32
    %v898 = vpop.permute.xlu0 %897
    %899 = vrot.lane.b32.xlu0 %v593, 32
    %v900 = vpop.permute.xlu0 %899
    %901 = vrot.lane.b32.xlu0 %v601, 32
    %v902 = vpop.permute.xlu0 %901
    %903 = vrot.lane.b32.xlu0 %v609, 32
    %v904 = vpop.permute.xlu0 %903
    %905 = vrot.lane.b32.xlu0 %v617, 32
    %v906 = vpop.permute.xlu0 %905
    %907 = vrot.lane.b32.xlu0 %v625, 32
    %v908 = vpop.permute.xlu0 %907
    %909 = vrot.lane.b32.xlu0 %v633, 32
    %v910 = vpop.permute.xlu0 %909
    %911 = vrot.lane.b32.xlu0 %v636, 32
    %v912 = vpop.permute.xlu0 %911
    %913 = vrot.lane.b32.xlu0 %v648, 32
    %v914 = vpop.permute.xlu0 %913
    %915 = vrot.lane.b32.xlu0 %v656, 32
    %v916 = vpop.permute.xlu0 %915
    %917 = vrot.lane.b32.xlu0 %v664, 32
    %v918 = vpop.permute.xlu0 %917
    %919 = vrot.lane.b32.xlu0 %v672, 32
    %v920 = vpop.permute.xlu0 %919
    %921 = vrot.lane.b32.xlu0 %v680, 32
    %v922 = vpop.permute.xlu0 %921
    %923 = vrot.lane.b32.xlu0 %v688, 32
    %v924 = vpop.permute.xlu0 %923
    %925 = vrot.lane.b32.xlu0 %v691, 32
    %v926 = vpop.permute.xlu0 %925
    %927 = vrot.lane.b32.xlu0 %v703, 32
    %v928 = vpop.permute.xlu0 %927
    %929 = vrot.lane.b32.xlu0 %v711, 32
    %v930 = vpop.permute.xlu0 %929
    %931 = vrot.lane.b32.xlu0 %v719, 32
    %v932 = vpop.permute.xlu0 %931
    %933 = vrot.lane.b32.xlu0 %v727, 32
    %v934 = vpop.permute.xlu0 %933
    %935 = vrot.lane.b32.xlu0 %v735, 32
    %v936 = vpop.permute.xlu0 %935
    %937 = vrot.lane.b32.xlu0 %v743, 32
    %v938 = vpop.permute.xlu0 %937
    %939 = vrot.lane.b32.xlu0 %v746, 32
    %v940 = vpop.permute.xlu0 %939
    %941 = vrot.lane.b32.xlu0 %v758, 32
    %v942 = vpop.permute.xlu0 %941
    %943 = vrot.lane.b32.xlu0 %v766, 32
    %v944 = vpop.permute.xlu0 %943
    %945 = vrot.lane.b32.xlu0 %v774, 32
    %v946 = vpop.permute.xlu0 %945
    %947 = vrot.lane.b32.xlu0 %v782, 32
    %v948 = vpop.permute.xlu0 %947
    %949 = vrot.lane.b32.xlu0 %v790, 32
    %v950 = vpop.permute.xlu0 %949
    %951 = vrot.lane.b32.xlu0 %v798, 32
    %v952 = vpop.permute.xlu0 %951
    %953 = vrot.lane.b32.xlu0 %v801, 32
    %v954 = vpop.permute.xlu0 %953
    %955 = vrot.lane.b32.xlu0 %v813, 32
    %v956 = vpop.permute.xlu0 %955
    %957 = vrot.lane.b32.xlu0 %v821, 32
    %v958 = vpop.permute.xlu0 %957
    %959 = vrot.lane.b32.xlu0 %v829, 32
    %v960 = vpop.permute.xlu0 %959
    %961 = vrot.lane.b32.xlu0 %v837, 32
    %v962 = vpop.permute.xlu0 %961
    %963 = vrot.lane.b32.xlu0 %v845, 32
    %v964 = vpop.permute.xlu0 %963
    %965 = vrot.lane.b32.xlu0 %v853, 32
    %v966 = vpop.permute.xlu0 %965
    %967 = vrot.lane.b32.xlu0 %v856, 32
    %v968 = vpop.permute.xlu0 %967
    %vm969 = vcmask 1046528
    %v970 = vrot.slane %v336, 1
    %v971 = vrot.slane %v337, 1
    %v972 = vsel %vm969, %v970, %v971
    %v973 = vrot.slane %v338, 1
    %v974 = vsel %vm969, %v971, %v973
    %v975 = vrot.slane %v339, 1
    %v976 = vsel %vm969, %v973, %v975
    %v977 = vrot.slane %v340, 1
    %v978 = vsel %vm969, %v975, %v977
    %v979 = vrot.slane %v341, 1
    %v980 = vsel %vm969, %v977, %v979
    %v981 = vrot.slane %v408, 1
    %v982 = vsel %vm969, %v979, %v981
    %v983 = vrot.slane %v343, 1
    %v984 = vrot.slane %v344, 1
    %v985 = vsel %vm969, %v983, %v984
    %v986 = vrot.slane %v345, 1
    %v987 = vsel %vm969, %v984, %v986
    %v988 = vrot.slane %v346, 1
    %v989 = vsel %vm969, %v986, %v988
    %v990 = vrot.slane %v347, 1
    %v991 = vsel %vm969, %v988, %v990
    %v992 = vrot.slane %v348, 1
    %v993 = vsel %vm969, %v990, %v992
    %v994 = vrot.slane %v409, 1
    %v995 = vsel %vm969, %v992, %v994
    %v996 = vrot.slane %v350, 1
    %v997 = vrot.slane %v351, 1
    %v998 = vsel %vm969, %v996, %v997
    %v999 = vrot.slane %v352, 1
    %v1000 = vsel %vm969, %v997, %v999
    %v1001 = vrot.slane %v353, 1
    %v1002 = vsel %vm969, %v999, %v1001
    %v1003 = vrot.slane %v354, 1
    %v1004 = vsel %vm969, %v1001, %v1003
    %v1005 = vrot.slane %v355, 1
    %v1006 = vsel %vm969, %v1003, %v1005
    %v1007 = vrot.slane %v410, 1
    %v1008 = vsel %vm969, %v1005, %v1007
    %v1009 = vrot.slane %v357, 1
    %v1010 = vrot.slane %v358, 1
    %v1011 = vsel %vm969, %v1009, %v1010
    %v1012 = vrot.slane %v359, 1
    %v1013 = vsel %vm969, %v1010, %v1012
    %v1014 = vrot.slane %v360, 1
    %v1015 = vsel %vm969, %v1012, %v1014
    %v1016 = vrot.slane %v361, 1
    %v1017 = vsel %vm969, %v1014, %v1016
    %v1018 = vrot.slane %v362, 1
    %v1019 = vsel %vm969, %v1016, %v1018
    %v1020 = vrot.slane %v411, 1
    %v1021 = vsel %vm969, %v1018, %v1020
    %v1022 = vrot.slane %v364, 1
    %v1023 = vrot.slane %v365, 1
    %v1024 = vsel %vm969, %v1022, %v1023
    %v1025 = vrot.slane %v366, 1
    %v1026 = vsel %vm969, %v1023, %v1025
    %v1027 = vrot.slane %v367, 1
    %v1028 = vsel %vm969, %v1025, %v1027
    %v1029 = vrot.slane %v368, 1
    %v1030 = vsel %vm969, %v1027, %v1029
    %v1031 = vrot.slane %v369, 1
    %v1032 = vsel %vm969, %v1029, %v1031
    %v1033 = vrot.slane %v412, 1
    %v1034 = vsel %vm969, %v1031, %v1033
    %v1035 = vrot.slane %v371, 1
    %v1036 = vrot.slane %v372, 1
    %v1037 = vsel %vm969, %v1035, %v1036
    %v1038 = vrot.slane %v373, 1
    %v1039 = vsel %vm969, %v1036, %v1038
    %v1040 = vrot.slane %v374, 1
    %v1041 = vsel %vm969, %v1038, %v1040
    %v1042 = vrot.slane %v375, 1
    %v1043 = vsel %vm969, %v1040, %v1042
    %v1044 = vrot.slane %v376, 1
    %v1045 = vsel %vm969, %v1042, %v1044
    %v1046 = vrot.slane %v413, 1
    %v1047 = vsel %vm969, %v1044, %v1046
    %v1048 = vrot.slane %v378, 1
    %v1049 = vrot.slane %v379, 1
    %v1050 = vsel %vm969, %v1048, %v1049
    %v1051 = vrot.slane %v380, 1
    %v1052 = vsel %vm969, %v1049, %v1051
    %v1053 = vrot.slane %v381, 1
    %v1054 = vsel %vm969, %v1051, %v1053
    %v1055 = vrot.slane %v382, 1
    %v1056 = vsel %vm969, %v1053, %v1055
    %v1057 = vrot.slane %v383, 1
    %v1058 = vsel %vm969, %v1055, %v1057
    %v1059 = vrot.slane %v414, 1
    %v1060 = vsel %vm969, %v1057, %v1059
    %v1061 = vrot.slane %v385, 1
    %v1062 = vrot.slane %v386, 1
    %v1063 = vsel %vm969, %v1061, %v1062
    %v1064 = vrot.slane %v387, 1
    %v1065 = vsel %vm969, %v1062, %v1064
    %v1066 = vrot.slane %v388, 1
    %v1067 = vsel %vm969, %v1064, %v1066
    %v1068 = vrot.slane %v389, 1
    %v1069 = vsel %vm969, %v1066, %v1068
    %v1070 = vrot.slane %v390, 1
    %v1071 = vsel %vm969, %v1068, %v1070
    %v1072 = vrot.slane %v415, 1
    %v1073 = vsel %vm969, %v1070, %v1072
    %1074 = vrot.lane.b32.xlu0 %v972, 64
    %v1075 = vpop.permute.xlu0 %1074
    %1076 = vrot.lane.b32.xlu0 %v974, 64
    %v1077 = vpop.permute.xlu0 %1076
    %1078 = vrot.lane.b32.xlu0 %v976, 64
    %v1079 = vpop.permute.xlu0 %1078
    %1080 = vrot.lane.b32.xlu0 %v978, 64
    %v1081 = vpop.permute.xlu0 %1080
    %1082 = vrot.lane.b32.xlu0 %v980, 64
    %v1083 = vpop.permute.xlu0 %1082
    %1084 = vrot.lane.b32.xlu0 %v982, 64
    %v1085 = vpop.permute.xlu0 %1084
    %1086 = vrot.lane.b32.xlu0 %v981, 64
    %v1087 = vpop.permute.xlu0 %1086
    %1088 = vrot.lane.b32.xlu0 %v985, 64
    %v1089 = vpop.permute.xlu0 %1088
    %1090 = vrot.lane.b32.xlu0 %v987, 64
    %v1091 = vpop.permute.xlu0 %1090
    %1092 = vrot.lane.b32.xlu0 %v989, 64
    %v1093 = vpop.permute.xlu0 %1092
    %1094 = vrot.lane.b32.xlu0 %v991, 64
    %v1095 = vpop.permute.xlu0 %1094
    %1096 = vrot.lane.b32.xlu0 %v993, 64
    %v1097 = vpop.permute.xlu0 %1096
    %1098 = vrot.lane.b32.xlu0 %v995, 64
    %v1099 = vpop.permute.xlu0 %1098
    %1100 = vrot.lane.b32.xlu0 %v994, 64
    %v1101 = vpop.permute.xlu0 %1100
    %1102 = vrot.lane.b32.xlu0 %v998, 64
    %v1103 = vpop.permute.xlu0 %1102
    %1104 = vrot.lane.b32.xlu0 %v1000, 64
    %v1105 = vpop.permute.xlu0 %1104
    %1106 = vrot.lane.b32.xlu0 %v1002, 64
    %v1107 = vpop.permute.xlu0 %1106
    %1108 = vrot.lane.b32.xlu0 %v1004, 64
    %v1109 = vpop.permute.xlu0 %1108
    %1110 = vrot.lane.b32.xlu0 %v1006, 64
    %v1111 = vpop.permute.xlu0 %1110
    %1112 = vrot.lane.b32.xlu0 %v1008, 64
    %v1113 = vpop.permute.xlu0 %1112
    %1114 = vrot.lane.b32.xlu0 %v1007, 64
    %v1115 = vpop.permute.xlu0 %1114
    %1116 = vrot.lane.b32.xlu0 %v1011, 64
    %v1117 = vpop.permute.xlu0 %1116
    %1118 = vrot.lane.b32.xlu0 %v1013, 64
    %v1119 = vpop.permute.xlu0 %1118
    %1120 = vrot.lane.b32.xlu0 %v1015, 64
    %v1121 = vpop.permute.xlu0 %1120
    %1122 = vrot.lane.b32.xlu0 %v1017, 64
    %v1123 = vpop.permute.xlu0 %1122
    %1124 = vrot.lane.b32.xlu0 %v1019, 64
    %v1125 = vpop.permute.xlu0 %1124
    %1126 = vrot.lane.b32.xlu0 %v1021, 64
    %v1127 = vpop.permute.xlu0 %1126
    %1128 = vrot.lane.b32.xlu0 %v1020, 64
    %v1129 = vpop.permute.xlu0 %1128
    %1130 = vrot.lane.b32.xlu0 %v1024, 64
    %v1131 = vpop.permute.xlu0 %1130
    %1132 = vrot.lane.b32.xlu0 %v1026, 64
    %v1133 = vpop.permute.xlu0 %1132
    %1134 = vrot.lane.b32.xlu0 %v1028, 64
    %v1135 = vpop.permute.xlu0 %1134
    %1136 = vrot.lane.b32.xlu0 %v1030, 64
    %v1137 = vpop.permute.xlu0 %1136
    %1138 = vrot.lane.b32.xlu0 %v1032, 64
    %v1139 = vpop.permute.xlu0 %1138
    %1140 = vrot.lane.b32.xlu0 %v1034, 64
    %v1141 = vpop.permute.xlu0 %1140
    %1142 = vrot.lane.b32.xlu0 %v1033, 64
    %v1143 = vpop.permute.xlu0 %1142
    %1144 = vrot.lane.b32.xlu0 %v1037, 64
    %v1145 = vpop.permute.xlu0 %1144
    %1146 = vrot.lane.b32.xlu0 %v1039, 64
    %v1147 = vpop.permute.xlu0 %1146
    %1148 = vrot.lane.b32.xlu0 %v1041, 64
    %v1149 = vpop.permute.xlu0 %1148
    %1150 = vrot.lane.b32.xlu0 %v1043, 64
    %v1151 = vpop.permute.xlu0 %1150
    %1152 = vrot.lane.b32.xlu0 %v1045, 64
    %v1153 = vpop.permute.xlu0 %1152
    %1154 = vrot.lane.b32.xlu0 %v1047, 64
    %v1155 = vpop.permute.xlu0 %1154
    %1156 = vrot.lane.b32.xlu0 %v1046, 64
    %v1157 = vpop.permute.xlu0 %1156
    %1158 = vrot.lane.b32.xlu0 %v1050, 64
    %v1159 = vpop.permute.xlu0 %1158
    %1160 = vrot.lane.b32.xlu0 %v1052, 64
    %v1161 = vpop.permute.xlu0 %1160
    %1162 = vrot.lane.b32.xlu0 %v1054, 64
    %v1163 = vpop.permute.xlu0 %1162
    %1164 = vrot.lane.b32.xlu0 %v1056, 64
    %v1165 = vpop.permute.xlu0 %1164
    %1166 = vrot.lane.b32.xlu0 %v1058, 64
    %v1167 = vpop.permute.xlu0 %1166
    %1168 = vrot.lane.b32.xlu0 %v1060, 64
    %v1169 = vpop.permute.xlu0 %1168
    %1170 = vrot.lane.b32.xlu0 %v1059, 64
    %v1171 = vpop.permute.xlu0 %1170
    %1172 = vrot.lane.b32.xlu0 %v1063, 64
    %v1173 = vpop.permute.xlu0 %1172
    %1174 = vrot.lane.b32.xlu0 %v1065, 64
    %v1175 = vpop.permute.xlu0 %1174
    %1176 = vrot.lane.b32.xlu0 %v1067, 64
    %v1177 = vpop.permute.xlu0 %1176
    %1178 = vrot.lane.b32.xlu0 %v1069, 64
    %v1179 = vpop.permute.xlu0 %1178
    %1180 = vrot.lane.b32.xlu0 %v1071, 64
    %v1181 = vpop.permute.xlu0 %1180
    %1182 = vrot.lane.b32.xlu0 %v1073, 64
    %v1183 = vpop.permute.xlu0 %1182
    %1184 = vrot.lane.b32.xlu0 %v1072, 64
    %v1185 = vpop.permute.xlu0 %1184
    %vm1186 = vsmask.f32 6400
    %v1187 = vrot.slane %v418, 1
    %v1188 = vrot.slane %v420, 2
    %v1189 = vor.u32 %v1187, %v1188
    %v1190 = vrot.slane %v429, 1
    %v1191 = vrot.slane %v425, 2
    %v1192 = vor.u32 %v1190, %v1191
    %v1193 = vsel %vm1186, %v1189, %v1192
    %v1194 = vrot.slane %v437, 1
    %v1195 = vrot.slane %v433, 2
    %v1196 = vor.u32 %v1194, %v1195
    %v1197 = vsel %vm1186, %v1192, %v1196
    %v1198 = vrot.slane %v445, 1
    %v1199 = vrot.slane %v441, 2
    %v1200 = vor.u32 %v1198, %v1199
    %v1201 = vsel %vm1186, %v1196, %v1200
    %v1202 = vrot.slane %v453, 1
    %v1203 = vrot.slane %v449, 2
    %v1204 = vor.u32 %v1202, %v1203
    %v1205 = vsel %vm1186, %v1200, %v1204
    %v1206 = vrot.slane %v461, 1
    %v1207 = vrot.slane %v457, 2
    %v1208 = vor.u32 %v1206, %v1207
    %v1209 = vsel %vm1186, %v1204, %v1208
    %v1210 = vrot.slane %v469, 1
    %v1211 = vrot.slane %v465, 2
    %v1212 = vor.u32 %v1210, %v1211
    %v1213 = vsel %vm1186, %v1208, %v1212
    %v1214 = vrot.slane %v473, 1
    %v1215 = vrot.slane %v475, 2
    %v1216 = vor.u32 %v1214, %v1215
    %v1217 = vrot.slane %v484, 1
    %v1218 = vrot.slane %v480, 2
    %v1219 = vor.u32 %v1217, %v1218
    %v1220 = vsel %vm1186, %v1216, %v1219
    %v1221 = vrot.slane %v492, 1
    %v1222 = vrot.slane %v488, 2
    %v1223 = vor.u32 %v1221, %v1222
    %v1224 = vsel %vm1186, %v1219, %v1223
    %v1225 = vrot.slane %v500, 1
    %v1226 = vrot.slane %v496, 2
    %v1227 = vor.u32 %v1225, %v1226
    %v1228 = vsel %vm1186, %v1223, %v1227
    %v1229 = vrot.slane %v508, 1
    %v1230 = vrot.slane %v504, 2
    %v1231 = vor.u32 %v1229, %v1230
    %v1232 = vsel %vm1186, %v1227, %v1231
    %v1233 = vrot.slane %v516, 1
    %v1234 = vrot.slane %v512, 2
    %v1235 = vor.u32 %v1233, %v1234
    %v1236 = vsel %vm1186, %v1231, %v1235
    %v1237 = vrot.slane %v524, 1
    %v1238 = vrot.slane %v520, 2
    %v1239 = vor.u32 %v1237, %v1238
    %v1240 = vsel %vm1186, %v1235, %v1239
    %v1241 = vrot.slane %v528, 1
    %v1242 = vrot.slane %v530, 2
    %v1243 = vor.u32 %v1241, %v1242
    %v1244 = vrot.slane %v539, 1
    %v1245 = vrot.slane %v535, 2
    %v1246 = vor.u32 %v1244, %v1245
    %v1247 = vsel %vm1186, %v1243, %v1246
    %v1248 = vrot.slane %v547, 1
    %v1249 = vrot.slane %v543, 2
    %v1250 = vor.u32 %v1248, %v1249
    %v1251 = vsel %vm1186, %v1246, %v1250
    %v1252 = vrot.slane %v555, 1
    %v1253 = vrot.slane %v551, 2
    %v1254 = vor.u32 %v1252, %v1253
    %v1255 = vsel %vm1186, %v1250, %v1254
    %v1256 = vrot.slane %v563, 1
    %v1257 = vrot.slane %v559, 2
    %v1258 = vor.u32 %v1256, %v1257
    %v1259 = vsel %vm1186, %v1254, %v1258
    %v1260 = vrot.slane %v571, 1
    %v1261 = vrot.slane %v567, 2
    %v1262 = vor.u32 %v1260, %v1261
    %v1263 = vsel %vm1186, %v1258, %v1262
    %v1264 = vrot.slane %v579, 1
    %v1265 = vrot.slane %v575, 2
    %v1266 = vor.u32 %v1264, %v1265
    %v1267 = vsel %vm1186, %v1262, %v1266
    %v1268 = vrot.slane %v583, 1
    %v1269 = vrot.slane %v585, 2
    %v1270 = vor.u32 %v1268, %v1269
    %v1271 = vrot.slane %v594, 1
    %v1272 = vrot.slane %v590, 2
    %v1273 = vor.u32 %v1271, %v1272
    %v1274 = vsel %vm1186, %v1270, %v1273
    %v1275 = vrot.slane %v602, 1
    %v1276 = vrot.slane %v598, 2
    %v1277 = vor.u32 %v1275, %v1276
    %v1278 = vsel %vm1186, %v1273, %v1277
    %v1279 = vrot.slane %v610, 1
    %v1280 = vrot.slane %v606, 2
    %v1281 = vor.u32 %v1279, %v1280
    %v1282 = vsel %vm1186, %v1277, %v1281
    %v1283 = vrot.slane %v618, 1
    %v1284 = vrot.slane %v614, 2
    %v1285 = vor.u32 %v1283, %v1284
    %v1286 = vsel %vm1186, %v1281, %v1285
    %v1287 = vrot.slane %v626, 1
    %v1288 = vrot.slane %v622, 2
    %v1289 = vor.u32 %v1287, %v1288
    %v1290 = vsel %vm1186, %v1285, %v1289
    %v1291 = vrot.slane %v634, 1
    %v1292 = vrot.slane %v630, 2
    %v1293 = vor.u32 %v1291, %v1292
    %v1294 = vsel %vm1186, %v1289, %v1293
    %v1295 = vrot.slane %v638, 1
    %v1296 = vrot.slane %v640, 2
    %v1297 = vor.u32 %v1295, %v1296
    %v1298 = vrot.slane %v649, 1
    %v1299 = vrot.slane %v645, 2
    %v1300 = vor.u32 %v1298, %v1299
    %v1301 = vsel %vm1186, %v1297, %v1300
    %v1302 = vrot.slane %v657, 1
    %v1303 = vrot.slane %v653, 2
    %v1304 = vor.u32 %v1302, %v1303
    %v1305 = vsel %vm1186, %v1300, %v1304
    %v1306 = vrot.slane %v665, 1
    %v1307 = vrot.slane %v661, 2
    %v1308 = vor.u32 %v1306, %v1307
    %v1309 = vsel %vm1186, %v1304, %v1308
    %v1310 = vrot.slane %v673, 1
    %v1311 = vrot.slane %v669, 2
    %v1312 = vor.u32 %v1310, %v1311
    %v1313 = vsel %vm1186, %v1308, %v1312
    %v1314 = vrot.slane %v681, 1
    %v1315 = vrot.slane %v677, 2
    %v1316 = vor.u32 %v1314, %v1315
    %v1317 = vsel %vm1186, %v1312, %v1316
    %v1318 = vrot.slane %v689, 1
    %v1319 = vrot.slane %v685, 2
    %v1320 = vor.u32 %v1318, %v1319
    %v1321 = vsel %vm1186, %v1316, %v1320
    %v1322 = vrot.slane %v693, 1
    %v1323 = vrot.slane %v695, 2
    %v1324 = vor.u32 %v1322, %v1323
    %v1325 = vrot.slane %v704, 1
    %v1326 = vrot.slane %v700, 2
    %v1327 = vor.u32 %v1325, %v1326
    %v1328 = vsel %vm1186, %v1324, %v1327
    %v1329 = vrot.slane %v712, 1
    %v1330 = vrot.slane %v708, 2
    %v1331 = vor.u32 %v1329, %v1330
    %v1332 = vsel %vm1186, %v1327, %v1331
    %v1333 = vrot.slane %v720, 1
    %v1334 = vrot.slane %v716, 2
    %v1335 = vor.u32 %v1333, %v1334
    %v1336 = vsel %vm1186, %v1331, %v1335
    %v1337 = vrot.slane %v728, 1
    %v1338 = vrot.slane %v724, 2
    %v1339 = vor.u32 %v1337, %v1338
    %v1340 = vsel %vm1186, %v1335, %v1339
    %v1341 = vrot.slane %v736, 1
    %v1342 = vrot.slane %v732, 2
    %v1343 = vor.u32 %v1341, %v1342
    %v1344 = vsel %vm1186, %v1339, %v1343
    %v1345 = vrot.slane %v744, 1
    %v1346 = vrot.slane %v740, 2
    %v1347 = vor.u32 %v1345, %v1346
    %v1348 = vsel %vm1186, %v1343, %v1347
    %v1349 = vrot.slane %v748, 1
    %v1350 = vrot.slane %v750, 2
    %v1351 = vor.u32 %v1349, %v1350
    %v1352 = vrot.slane %v759, 1
    %v1353 = vrot.slane %v755, 2
    %v1354 = vor.u32 %v1352, %v1353
    %v1355 = vsel %vm1186, %v1351, %v1354
    %v1356 = vrot.slane %v767, 1
    %v1357 = vrot.slane %v763, 2
    %v1358 = vor.u32 %v1356, %v1357
    %v1359 = vsel %vm1186, %v1354, %v1358
    %v1360 = vrot.slane %v775, 1
    %v1361 = vrot.slane %v771, 2
    %v1362 = vor.u32 %v1360, %v1361
    %v1363 = vsel %vm1186, %v1358, %v1362
    %v1364 = vrot.slane %v783, 1
    %v1365 = vrot.slane %v779, 2
    %v1366 = vor.u32 %v1364, %v1365
    %v1367 = vsel %vm1186, %v1362, %v1366
    %v1368 = vrot.slane %v791, 1
    %v1369 = vrot.slane %v787, 2
    %v1370 = vor.u32 %v1368, %v1369
    %v1371 = vsel %vm1186, %v1366, %v1370
    %v1372 = vrot.slane %v799, 1
    %v1373 = vrot.slane %v795, 2
    %v1374 = vor.u32 %v1372, %v1373
    %v1375 = vsel %vm1186, %v1370, %v1374
    %v1376 = vrot.slane %v803, 1
    %v1377 = vrot.slane %v805, 2
    %v1378 = vor.u32 %v1376, %v1377
    %v1379 = vrot.slane %v814, 1
    %v1380 = vrot.slane %v810, 2
    %v1381 = vor.u32 %v1379, %v1380
    %v1382 = vsel %vm1186, %v1378, %v1381
    %v1383 = vrot.slane %v822, 1
    %v1384 = vrot.slane %v818, 2
    %v1385 = vor.u32 %v1383, %v1384
    %v1386 = vsel %vm1186, %v1381, %v1385
    %v1387 = vrot.slane %v830, 1
    %v1388 = vrot.slane %v826, 2
    %v1389 = vor.u32 %v1387, %v1388
    %v1390 = vsel %vm1186, %v1385, %v1389
    %v1391 = vrot.slane %v838, 1
    %v1392 = vrot.slane %v834, 2
    %v1393 = vor.u32 %v1391, %v1392
    %v1394 = vsel %vm1186, %v1389, %v1393
    %v1395 = vrot.slane %v846, 1
    %v1396 = vrot.slane %v842, 2
    %v1397 = vor.u32 %v1395, %v1396
    %v1398 = vsel %vm1186, %v1393, %v1397
    %v1399 = vrot.slane %v854, 1
    %v1400 = vrot.slane %v850, 2
    %v1401 = vor.u32 %v1399, %v1400
    %v1402 = vsel %vm1186, %v1397, %v1401
    %1403 = vrot.lane.b32.xlu0 %v1193, 96
    %v1404 = vpop.permute.xlu0 %1403
    %1405 = vrot.lane.b32.xlu0 %v1197, 96
    %v1406 = vpop.permute.xlu0 %1405
    %1407 = vrot.lane.b32.xlu0 %v1201, 96
    %v1408 = vpop.permute.xlu0 %1407
    %1409 = vrot.lane.b32.xlu0 %v1205, 96
    %v1410 = vpop.permute.xlu0 %1409
    %1411 = vrot.lane.b32.xlu0 %v1209, 96
    %v1412 = vpop.permute.xlu0 %1411
    %1413 = vrot.lane.b32.xlu0 %v1213, 96
    %v1414 = vpop.permute.xlu0 %1413
    %1415 = vrot.lane.b32.xlu0 %v1212, 96
    %v1416 = vpop.permute.xlu0 %1415
    %1417 = vrot.lane.b32.xlu0 %v1220, 96
    %v1418 = vpop.permute.xlu0 %1417
    %1419 = vrot.lane.b32.xlu0 %v1224, 96
    %v1420 = vpop.permute.xlu0 %1419
    %1421 = vrot.lane.b32.xlu0 %v1228, 96
    %v1422 = vpop.permute.xlu0 %1421
    %1423 = vrot.lane.b32.xlu0 %v1232, 96
    %v1424 = vpop.permute.xlu0 %1423
    %1425 = vrot.lane.b32.xlu0 %v1236, 96
    %v1426 = vpop.permute.xlu0 %1425
    %1427 = vrot.lane.b32.xlu0 %v1240, 96
    %v1428 = vpop.permute.xlu0 %1427
    %1429 = vrot.lane.b32.xlu0 %v1239, 96
    %v1430 = vpop.permute.xlu0 %1429
    %1431 = vrot.lane.b32.xlu0 %v1247, 96
    %v1432 = vpop.permute.xlu0 %1431
    %1433 = vrot.lane.b32.xlu0 %v1251, 96
    %v1434 = vpop.permute.xlu0 %1433
    %1435 = vrot.lane.b32.xlu0 %v1255, 96
    %v1436 = vpop.permute.xlu0 %1435
    %1437 = vrot.lane.b32.xlu0 %v1259, 96
    %v1438 = vpop.permute.xlu0 %1437
    %1439 = vrot.lane.b32.xlu0 %v1263, 96
    %v1440 = vpop.permute.xlu0 %1439
    %1441 = vrot.lane.b32.xlu0 %v1267, 96
    %v1442 = vpop.permute.xlu0 %1441
    %1443 = vrot.lane.b32.xlu0 %v1266, 96
    %v1444 = vpop.permute.xlu0 %1443
    %1445 = vrot.lane.b32.xlu0 %v1274, 96
    %v1446 = vpop.permute.xlu0 %1445
    %1447 = vrot.lane.b32.xlu0 %v1278, 96
    %v1448 = vpop.permute.xlu0 %1447
    %1449 = vrot.lane.b32.xlu0 %v1282, 96
    %v1450 = vpop.permute.xlu0 %1449
    %1451 = vrot.lane.b32.xlu0 %v1286, 96
    %v1452 = vpop.permute.xlu0 %1451
    %1453 = vrot.lane.b32.xlu0 %v1290, 96
    %v1454 = vpop.permute.xlu0 %1453
    %1455 = vrot.lane.b32.xlu0 %v1294, 96
    %v1456 = vpop.permute.xlu0 %1455
    %1457 = vrot.lane.b32.xlu0 %v1293, 96
    %v1458 = vpop.permute.xlu0 %1457
    %1459 = vrot.lane.b32.xlu0 %v1301, 96
    %v1460 = vpop.permute.xlu0 %1459
    %1461 = vrot.lane.b32.xlu0 %v1305, 96
    %v1462 = vpop.permute.xlu0 %1461
    %1463 = vrot.lane.b32.xlu0 %v1309, 96
    %v1464 = vpop.permute.xlu0 %1463
    %1465 = vrot.lane.b32.xlu0 %v1313, 96
    %v1466 = vpop.permute.xlu0 %1465
    %1467 = vrot.lane.b32.xlu0 %v1317, 96
    %v1468 = vpop.permute.xlu0 %1467
    %1469 = vrot.lane.b32.xlu0 %v1321, 96
    %v1470 = vpop.permute.xlu0 %1469
    %1471 = vrot.lane.b32.xlu0 %v1320, 96
    %v1472 = vpop.permute.xlu0 %1471
    %1473 = vrot.lane.b32.xlu0 %v1328, 96
    %v1474 = vpop.permute.xlu0 %1473
    %1475 = vrot.lane.b32.xlu0 %v1332, 96
    %v1476 = vpop.permute.xlu0 %1475
    %1477 = vrot.lane.b32.xlu0 %v1336, 96
    %v1478 = vpop.permute.xlu0 %1477
    %1479 = vrot.lane.b32.xlu0 %v1340, 96
    %v1480 = vpop.permute.xlu0 %1479
    %1481 = vrot.lane.b32.xlu0 %v1344, 96
    %v1482 = vpop.permute.xlu0 %1481
    %1483 = vrot.lane.b32.xlu0 %v1348, 96
    %v1484 = vpop.permute.xlu0 %1483
    %1485 = vrot.lane.b32.xlu0 %v1347, 96
    %v1486 = vpop.permute.xlu0 %1485
    %1487 = vrot.lane.b32.xlu0 %v1355, 96
    %v1488 = vpop.permute.xlu0 %1487
    %1489 = vrot.lane.b32.xlu0 %v1359, 96
    %v1490 = vpop.permute.xlu0 %1489
    %1491 = vrot.lane.b32.xlu0 %v1363, 96
    %v1492 = vpop.permute.xlu0 %1491
    %1493 = vrot.lane.b32.xlu0 %v1367, 96
    %v1494 = vpop.permute.xlu0 %1493
    %1495 = vrot.lane.b32.xlu0 %v1371, 96
    %v1496 = vpop.permute.xlu0 %1495
    %1497 = vrot.lane.b32.xlu0 %v1375, 96
    %v1498 = vpop.permute.xlu0 %1497
    %1499 = vrot.lane.b32.xlu0 %v1374, 96
    %v1500 = vpop.permute.xlu0 %1499
    %1501 = vrot.lane.b32.xlu0 %v1382, 96
    %v1502 = vpop.permute.xlu0 %1501
    %1503 = vrot.lane.b32.xlu0 %v1386, 96
    %v1504 = vpop.permute.xlu0 %1503
    %1505 = vrot.lane.b32.xlu0 %v1390, 96
    %v1506 = vpop.permute.xlu0 %1505
    %1507 = vrot.lane.b32.xlu0 %v1394, 96
    %v1508 = vpop.permute.xlu0 %1507
    %1509 = vrot.lane.b32.xlu0 %v1398, 96
    %v1510 = vpop.permute.xlu0 %1509
    %1511 = vrot.lane.b32.xlu0 %v1402, 96
    %v1512 = vpop.permute.xlu0 %1511
    %1513 = vrot.lane.b32.xlu0 %v1401, 96
    %v1514 = vpop.permute.xlu0 %1513
    %vm1515 = vcmask 261120
    %v1517 = vsel %vm1515, %v336, %v858
    %v1519 = vsel %vm1515, %v337, %v860
    %v1521 = vsel %vm1515, %v338, %v862
    %v1523 = vsel %vm1515, %v339, %v864
    %v1525 = vsel %vm1515, %v340, %v866
    %v1527 = vsel %vm1515, %v341, %v868
    %v1530 = vsel %vm1515, %v342, %v870
    %v1532 = vsel %vm1515, %v343, %v872
    %v1534 = vsel %vm1515, %v344, %v874
    %v1536 = vsel %vm1515, %v345, %v876
    %v1538 = vsel %vm1515, %v346, %v878
    %v1540 = vsel %vm1515, %v347, %v880
    %v1542 = vsel %vm1515, %v348, %v882
    %v1545 = vsel %vm1515, %v349, %v884
    %v1547 = vsel %vm1515, %v350, %v886
    %v1549 = vsel %vm1515, %v351, %v888
    %v1551 = vsel %vm1515, %v352, %v890
    %v1553 = vsel %vm1515, %v353, %v892
    %v1555 = vsel %vm1515, %v354, %v894
    %v1557 = vsel %vm1515, %v355, %v896
    %v1560 = vsel %vm1515, %v356, %v898
    %v1562 = vsel %vm1515, %v357, %v900
    %v1564 = vsel %vm1515, %v358, %v902
    %v1566 = vsel %vm1515, %v359, %v904
    %v1568 = vsel %vm1515, %v360, %v906
    %v1570 = vsel %vm1515, %v361, %v908
    %v1572 = vsel %vm1515, %v362, %v910
    %v1575 = vsel %vm1515, %v363, %v912
    %v1577 = vsel %vm1515, %v364, %v914
    %v1579 = vsel %vm1515, %v365, %v916
    %v1581 = vsel %vm1515, %v366, %v918
    %v1583 = vsel %vm1515, %v367, %v920
    %v1585 = vsel %vm1515, %v368, %v922
    %v1587 = vsel %vm1515, %v369, %v924
    %v1590 = vsel %vm1515, %v370, %v926
    %v1592 = vsel %vm1515, %v371, %v928
    %v1594 = vsel %vm1515, %v372, %v930
    %v1596 = vsel %vm1515, %v373, %v932
    %v1598 = vsel %vm1515, %v374, %v934
    %v1600 = vsel %vm1515, %v375, %v936
    %v1602 = vsel %vm1515, %v376, %v938
    %v1605 = vsel %vm1515, %v377, %v940
    %v1607 = vsel %vm1515, %v378, %v942
    %v1609 = vsel %vm1515, %v379, %v944
    %v1611 = vsel %vm1515, %v380, %v946
    %v1613 = vsel %vm1515, %v381, %v948
    %v1615 = vsel %vm1515, %v382, %v950
    %v1617 = vsel %vm1515, %v383, %v952
    %v1620 = vsel %vm1515, %v384, %v954
    %v1622 = vsel %vm1515, %v385, %v956
    %v1624 = vsel %vm1515, %v386, %v958
    %v1626 = vsel %vm1515, %v387, %v960
    %v1628 = vsel %vm1515, %v388, %v962
    %v1630 = vsel %vm1515, %v389, %v964
    %v1632 = vsel %vm1515, %v390, %v966
    %v1635 = vsel %vm1515, %v391, %v968
    %vm1636 = vcmask 523264
    %v1638 = vsel %vm1636, %v1517, %v1075
    %v1640 = vsel %vm1636, %v1519, %v1077
    %v1642 = vsel %vm1636, %v1521, %v1079
    %v1644 = vsel %vm1636, %v1523, %v1081
    %v1646 = vsel %vm1636, %v1525, %v1083
    %v1648 = vsel %vm1636, %v1527, %v1085
    %v1650 = vsel %vm1636, %v1530, %v1087
    %v1652 = vsel %vm1636, %v1532, %v1089
    %v1654 = vsel %vm1636, %v1534, %v1091
    %v1656 = vsel %vm1636, %v1536, %v1093
    %v1658 = vsel %vm1636, %v1538, %v1095
    %v1660 = vsel %vm1636, %v1540, %v1097
    %v1662 = vsel %vm1636, %v1542, %v1099
    %v1664 = vsel %vm1636, %v1545, %v1101
    %v1666 = vsel %vm1636, %v1547, %v1103
    %v1668 = vsel %vm1636, %v1549, %v1105
    %v1670 = vsel %vm1636, %v1551, %v1107
    %v1672 = vsel %vm1636, %v1553, %v1109
    %v1674 = vsel %vm1636, %v1555, %v1111
    %v1676 = vsel %vm1636, %v1557, %v1113
    %v1678 = vsel %vm1636, %v1560, %v1115
    %v1680 = vsel %vm1636, %v1562, %v1117
    %v1682 = vsel %vm1636, %v1564, %v1119
    %v1684 = vsel %vm1636, %v1566, %v1121
    %v1686 = vsel %vm1636, %v1568, %v1123
    %v1688 = vsel %vm1636, %v1570, %v1125
    %v1690 = vsel %vm1636, %v1572, %v1127
    %v1692 = vsel %vm1636, %v1575, %v1129
    %v1694 = vsel %vm1636, %v1577, %v1131
    %v1696 = vsel %vm1636, %v1579, %v1133
    %v1698 = vsel %vm1636, %v1581, %v1135
    %v1700 = vsel %vm1636, %v1583, %v1137
    %v1702 = vsel %vm1636, %v1585, %v1139
    %v1704 = vsel %vm1636, %v1587, %v1141
    %v1706 = vsel %vm1636, %v1590, %v1143
    %v1708 = vsel %vm1636, %v1592, %v1145
    %v1710 = vsel %vm1636, %v1594, %v1147
    %v1712 = vsel %vm1636, %v1596, %v1149
    %v1714 = vsel %vm1636, %v1598, %v1151
    %v1716 = vsel %vm1636, %v1600, %v1153
    %v1718 = vsel %vm1636, %v1602, %v1155
    %v1720 = vsel %vm1636, %v1605, %v1157
    %v1722 = vsel %vm1636, %v1607, %v1159
    %v1724 = vsel %vm1636, %v1609, %v1161
    %v1726 = vsel %vm1636, %v1611, %v1163
    %v1728 = vsel %vm1636, %v1613, %v1165
    %v1730 = vsel %vm1636, %v1615, %v1167
    %v1732 = vsel %vm1636, %v1617, %v1169
    %v1734 = vsel %vm1636, %v1620, %v1171
    %v1736 = vsel %vm1636, %v1622, %v1173
    %v1738 = vsel %vm1636, %v1624, %v1175
    %v1740 = vsel %vm1636, %v1626, %v1177
    %v1742 = vsel %vm1636, %v1628, %v1179
    %v1744 = vsel %vm1636, %v1630, %v1181
    %v1746 = vsel %vm1636, %v1632, %v1183
    %v1748 = vsel %vm1636, %v1635, %v1185
    %vm1749 = vcmask 785408
    %v1751 = vsel %vm1749, %v1638, %v1404
    %v1753 = vsel %vm1749, %v1640, %v1406
    %v1755 = vsel %vm1749, %v1642, %v1408
    %v1757 = vsel %vm1749, %v1644, %v1410
    %v1759 = vsel %vm1749, %v1646, %v1412
    %v1761 = vsel %vm1749, %v1648, %v1414
    %v1763 = vsel %vm1749, %v1650, %v1416
    %v1765 = vsel %vm1749, %v1652, %v1418
    %v1767 = vsel %vm1749, %v1654, %v1420
    %v1769 = vsel %vm1749, %v1656, %v1422
    %v1771 = vsel %vm1749, %v1658, %v1424
    %v1773 = vsel %vm1749, %v1660, %v1426
    %v1775 = vsel %vm1749, %v1662, %v1428
    %v1777 = vsel %vm1749, %v1664, %v1430
    %v1779 = vsel %vm1749, %v1666, %v1432
    %v1781 = vsel %vm1749, %v1668, %v1434
    %v1783 = vsel %vm1749, %v1670, %v1436
    %v1785 = vsel %vm1749, %v1672, %v1438
    %v1787 = vsel %vm1749, %v1674, %v1440
    %v1789 = vsel %vm1749, %v1676, %v1442
    %v1791 = vsel %vm1749, %v1678, %v1444
    %v1793 = vsel %vm1749, %v1680, %v1446
    %v1795 = vsel %vm1749, %v1682, %v1448
    %v1797 = vsel %vm1749, %v1684, %v1450
    %v1799 = vsel %vm1749, %v1686, %v1452
    %v1801 = vsel %vm1749, %v1688, %v1454
    %v1803 = vsel %vm1749, %v1690, %v1456
    %v1805 = vsel %vm1749, %v1692, %v1458
    %v1807 = vsel %vm1749, %v1694, %v1460
    %v1809 = vsel %vm1749, %v1696, %v1462
    %v1811 = vsel %vm1749, %v1698, %v1464
    %v1813 = vsel %vm1749, %v1700, %v1466
    %v1815 = vsel %vm1749, %v1702, %v1468
    %v1817 = vsel %vm1749, %v1704, %v1470
    %v1819 = vsel %vm1749, %v1706, %v1472
    %v1821 = vsel %vm1749, %v1708, %v1474
    %v1823 = vsel %vm1749, %v1710, %v1476
    %v1825 = vsel %vm1749, %v1712, %v1478
    %v1827 = vsel %vm1749, %v1714, %v1480
    %v1829 = vsel %vm1749, %v1716, %v1482
    %v1831 = vsel %vm1749, %v1718, %v1484
    %v1833 = vsel %vm1749, %v1720, %v1486
    %v1835 = vsel %vm1749, %v1722, %v1488
    %v1837 = vsel %vm1749, %v1724, %v1490
    %v1839 = vsel %vm1749, %v1726, %v1492
    %v1841 = vsel %vm1749, %v1728, %v1494
    %v1843 = vsel %vm1749, %v1730, %v1496
    %v1845 = vsel %vm1749, %v1732, %v1498
    %v1847 = vsel %vm1749, %v1734, %v1500
    %v1849 = vsel %vm1749, %v1736, %v1502
    %v1851 = vsel %vm1749, %v1738, %v1504
    %v1853 = vsel %vm1749, %v1740, %v1506
    %v1855 = vsel %vm1749, %v1742, %v1508
    %v1857 = vsel %vm1749, %v1744, %v1510
    %v1859 = vsel %vm1749, %v1746, %v1512
    %v1861 = vsel %vm1749, %v1748, %v1514
    %v1918 = vunpack.c.l.b16 %v1751
    %v1919 = vunpack.c.h.b16 %v1751
    %v1920 = vunpack.c.l.b16 %v1753
    %v1921 = vunpack.c.h.b16 %v1753
    %v1922 = vunpack.c.l.b16 %v1755
    %v1923 = vunpack.c.h.b16 %v1755
    %v1924 = vunpack.c.l.b16 %v1757
    %v1925 = vunpack.c.h.b16 %v1757
    %v1926 = vunpack.c.l.b16 %v1759
    %v1927 = vunpack.c.h.b16 %v1759
    %v1928 = vunpack.c.l.b16 %v1761
    %v1929 = vunpack.c.h.b16 %v1761
    %v1930 = vunpack.c.l.b16 %v1763
    %v1931 = vunpack.c.l.b16 %v1765
    %v1932 = vunpack.c.h.b16 %v1765
    %v1933 = vunpack.c.l.b16 %v1767
    %v1934 = vunpack.c.h.b16 %v1767
    %v1935 = vunpack.c.l.b16 %v1769
    %v1936 = vunpack.c.h.b16 %v1769
    %v1937 = vunpack.c.l.b16 %v1771
    %v1938 = vunpack.c.h.b16 %v1771
    %v1939 = vunpack.c.l.b16 %v1773
    %v1940 = vunpack.c.h.b16 %v1773
    %v1941 = vunpack.c.l.b16 %v1775
    %v1942 = vunpack.c.h.b16 %v1775
    %v1943 = vunpack.c.l.b16 %v1777
    %v1944 = vunpack.c.l.b16 %v1779
    %v1945 = vunpack.c.h.b16 %v1779
    %v1946 = vunpack.c.l.b16 %v1781
    %v1947 = vunpack.c.h.b16 %v1781
    %v1948 = vunpack.c.l.b16 %v1783
    %v1949 = vunpack.c.h.b16 %v1783
    %v1950 = vunpack.c.l.b16 %v1785
    %v1951 = vunpack.c.h.b16 %v1785
    %v1952 = vunpack.c.l.b16 %v1787
    %v1953 = vunpack.c.h.b16 %v1787
    %v1954 = vunpack.c.l.b16 %v1789
    %v1955 = vunpack.c.h.b16 %v1789
    %v1956 = vunpack.c.l.b16 %v1791
    %v1957 = vunpack.c.l.b16 %v1793
    %v1958 = vunpack.c.h.b16 %v1793
    %v1959 = vunpack.c.l.b16 %v1795
    %v1960 = vunpack.c.h.b16 %v1795
    %v1961 = vunpack.c.l.b16 %v1797
    %v1962 = vunpack.c.h.b16 %v1797
    %v1963 = vunpack.c.l.b16 %v1799
    %v1964 = vunpack.c.h.b16 %v1799
    %v1965 = vunpack.c.l.b16 %v1801
    %v1966 = vunpack.c.h.b16 %v1801
    %v1967 = vunpack.c.l.b16 %v1803
    %v1968 = vunpack.c.h.b16 %v1803
    %v1969 = vunpack.c.l.b16 %v1805
    %v1970 = vunpack.c.l.b16 %v1807
    %v1971 = vunpack.c.h.b16 %v1807
    %v1972 = vunpack.c.l.b16 %v1809
    %v1973 = vunpack.c.h.b16 %v1809
    %v1974 = vunpack.c.l.b16 %v1811
    %v1975 = vunpack.c.h.b16 %v1811
    %v1976 = vunpack.c.l.b16 %v1813
    %v1977 = vunpack.c.h.b16 %v1813
    %v1978 = vunpack.c.l.b16 %v1815
    %v1979 = vunpack.c.h.b16 %v1815
    %v1980 = vunpack.c.l.b16 %v1817
    %v1981 = vunpack.c.h.b16 %v1817
    %v1982 = vunpack.c.l.b16 %v1819
    %v1983 = vunpack.c.l.b16 %v1821
    %v1984 = vunpack.c.h.b16 %v1821
    %v1985 = vunpack.c.l.b16 %v1823
    %v1986 = vunpack.c.h.b16 %v1823
    %v1987 = vunpack.c.l.b16 %v1825
    %v1988 = vunpack.c.h.b16 %v1825
    %v1989 = vunpack.c.l.b16 %v1827
    %v1990 = vunpack.c.h.b16 %v1827
    %v1991 = vunpack.c.l.b16 %v1829
    %v1992 = vunpack.c.h.b16 %v1829
    %v1993 = vunpack.c.l.b16 %v1831
    %v1994 = vunpack.c.h.b16 %v1831
    %v1995 = vunpack.c.l.b16 %v1833
    %v1996 = vunpack.c.l.b16 %v1835
    %v1997 = vunpack.c.h.b16 %v1835
    %v1998 = vunpack.c.l.b16 %v1837
    %v1999 = vunpack.c.h.b16 %v1837
    %v2000 = vunpack.c.l.b16 %v1839
    %v2001 = vunpack.c.h.b16 %v1839
    %v2002 = vunpack.c.l.b16 %v1841
    %v2003 = vunpack.c.h.b16 %v1841
    %v2004 = vunpack.c.l.b16 %v1843
    %v2005 = vunpack.c.h.b16 %v1843
    %v2006 = vunpack.c.l.b16 %v1845
    %v2007 = vunpack.c.h.b16 %v1845
    %v2008 = vunpack.c.l.b16 %v1847
    %v2009 = vunpack.c.l.b16 %v1849
    %v2010 = vunpack.c.h.b16 %v1849
    %v2011 = vunpack.c.l.b16 %v1851
    %v2012 = vunpack.c.h.b16 %v1851
    %v2013 = vunpack.c.l.b16 %v1853
    %v2014 = vunpack.c.h.b16 %v1853
    %v2015 = vunpack.c.l.b16 %v1855
    %v2016 = vunpack.c.h.b16 %v1855
    %v2017 = vunpack.c.l.b16 %v1857
    %v2018 = vunpack.c.h.b16 %v1857
    %v2019 = vunpack.c.l.b16 %v1859
    %v2020 = vunpack.c.h.b16 %v1859
    %v2021 = vunpack.c.l.b16 %v1861
    %v2022 = vld [vmem:[%s1] sm:$0xf]
    %v2023 = vld [vmem:[%s1 + $0x4] sm:$0xf]
    %v2024 = vld [vmem:[%s1 + $0x8] sm:$0xf]
    %v2025 = vld [vmem:[%s1 + $0xc] sm:$0xf]
    %v2026 = vld [vmem:[%s1 + $0x10] sm:$0xf]
    %v2027 = vld [vmem:[%s1 + $0x14] sm:$0xf]
    %v2028 = vld [vmem:[%s1 + $0x18] sm:$0xf]
    %v2029 = vld [vmem:[%s1 + $0x1c] sm:$0xf]
    %v2030 = vld [vmem:[%s1 + $0x20] sm:$0xf]
    %v2031 = vld [vmem:[%s1 + $0x24] sm:$0xf]
    %v2032 = vld [vmem:[%s1 + $0x28] sm:$0xf]
    %v2033 = vld [vmem:[%s1 + $0x2c] sm:$0xf]
    %v2034 = vld [vmem:[%s1 + $0x30] sm:$0xf]
    %v2035 = vld [vmem:[%s1 + $0x34] sm:$0xf]
    %v2036 = vld [vmem:[%s1 + $0x38] sm:$0xf]
    %v2037 = vld [vmem:[%s1 + $0x3c] sm:$0xf]
    %v2038 = vld [vmem:[%s2] sm:$0x1]
    %v2040 = vlaneseq
    %v2041 = vshrl.u32 %v2040, 7
    %v2042 = vsub.s32 0, %v2041
    %v2043 = vrot.slane %v2038, %v2042
    %v2045 = vpack.c.b16 %v1919, %v1918
    %v2046 = vpack.c.b16 %v1921, %v1920
    %v2047 = vpack.c.b16 %v1923, %v1922
    %v2048 = vpack.c.b16 %v1925, %v1924
    %v2049 = vpack.c.b16 %v1927, %v1926
    %v2050 = vpack.c.b16 %v1929, %v1928
    %v2051 = vpack.c.b16 %v1931, %v1930
    %v2052 = vpack.c.b16 %v1933, %v1932
    %v2053 = vpack.c.b16 %v1935, %v1934
    %v2054 = vpack.c.b16 %v1937, %v1936
    %v2055 = vpack.c.b16 %v1939, %v1938
    %v2056 = vpack.c.b16 %v1941, %v1940
    %v2057 = vpack.c.b16 %v1943, %v1942
    %v2058 = vpack.c.b16 %v1945, %v1944
    %v2059 = vpack.c.b16 %v1947, %v1946
    %v2060 = vpack.c.b16 %v1949, %v1948
    %v2061 = vpack.c.b16 %v1951, %v1950
    %v2062 = vpack.c.b16 %v1953, %v1952
    %v2063 = vpack.c.b16 %v1955, %v1954
    %v2064 = vpack.c.b16 %v1957, %v1956
    %v2065 = vpack.c.b16 %v1959, %v1958
    %v2066 = vpack.c.b16 %v1961, %v1960
    %v2067 = vpack.c.b16 %v1963, %v1962
    %v2068 = vpack.c.b16 %v1965, %v1964
    %v2069 = vpack.c.b16 %v1967, %v1966
    %v2070 = vpack.c.b16 %v1969, %v1968
    %v2071 = vpack.c.b16 %v1971, %v1970
    %v2072 = vpack.c.b16 %v1973, %v1972
    %v2073 = vpack.c.b16 %v1975, %v1974
    %v2074 = vpack.c.b16 %v1977, %v1976
    %v2075 = vpack.c.b16 %v1979, %v1978
    %v2076 = vpack.c.b16 %v1981, %v1980
    %v2077 = vpack.c.b16 %v1983, %v1982
    %v2078 = vpack.c.b16 %v1985, %v1984
    %v2079 = vpack.c.b16 %v1987, %v1986
    %v2080 = vpack.c.b16 %v1989, %v1988
    %v2081 = vpack.c.b16 %v1991, %v1990
    %v2082 = vpack.c.b16 %v1993, %v1992
    %v2083 = vpack.c.b16 %v1995, %v1994
    %v2084 = vpack.c.b16 %v1997, %v1996
    %v2085 = vpack.c.b16 %v1999, %v1998
    %v2086 = vpack.c.b16 %v2001, %v2000
    %v2087 = vpack.c.b16 %v2003, %v2002
    %v2088 = vpack.c.b16 %v2005, %v2004
    %v2089 = vpack.c.b16 %v2007, %v2006
    %v2090 = vpack.c.b16 %v2009, %v2008
    %v2091 = vpack.c.b16 %v2011, %v2010
    %v2092 = vpack.c.b16 %v2013, %v2012
    %v2093 = vpack.c.b16 %v2015, %v2014
    %v2094 = vpack.c.b16 %v2017, %v2016
    %v2095 = vpack.c.b16 %v2019, %v2018
    %v2096 = vpack.c.b16 %v2021, %v2020
    %v2165 = vunpack.c.l.b16 %v2022
    %v2166 = vunpack.c.l.b16 %v2023
    %v2167 = vunpack.c.l.b16 %v2024
    %v2168 = vunpack.c.l.b16 %v2025
    %v2169 = vunpack.c.l.b16 %v2026
    %v2170 = vunpack.c.l.b16 %v2027
    %v2171 = vunpack.c.l.b16 %v2028
    %v2172 = vunpack.c.l.b16 %v2029
    %v2173 = vunpack.c.l.b16 %v2030
    %v2174 = vunpack.c.l.b16 %v2031
    %v2175 = vunpack.c.l.b16 %v2032
    %v2176 = vunpack.c.l.b16 %v2033
    %v2177 = vunpack.c.l.b16 %v2034
    %v2178 = vunpack.c.l.b16 %v2035
    %v2179 = vunpack.c.l.b16 %v2036
    %v2180 = vunpack.c.l.b16 %v2037
    %v2181 = vpack.c.b16 %v2166, %v2165
    %v2182 = vpack.c.b16 %v2168, %v2167
    %v2183 = vpack.c.b16 %v2170, %v2169
    %v2184 = vpack.c.b16 %v2172, %v2171
    %v2185 = vpack.c.b16 %v2174, %v2173
    %v2186 = vpack.c.b16 %v2176, %v2175
    %v2187 = vpack.c.b16 %v2178, %v2177
    %v2188 = vpack.c.b16 %v2180, %v2179
    %2197 = vmatprep.subr.bf16.mxu0 0
    %2198 = vmatpush1.bf16.msra.mxu0 %v2181
    %2199 = vmatprep.subr.bf16.mxu0 0
    %2200 = vmatpush1.bf16.msra.mxu0 %v2182
    %2201 = vmatprep.subr.bf16.mxu0 0
    %2202 = vmatpush1.bf16.msra.mxu0 %v2183
    %2203 = vmatprep.subr.bf16.mxu0 0
    %2204 = vmatpush1.bf16.msra.mxu0 %v2184
    %2205 = vmatprep.subr.bf16.mxu0 0
    %2206 = vmatpush1.bf16.msra.mxu0 %v2185
    %2207 = vmatprep.subr.bf16.mxu0 0
    %2208 = vmatpush1.bf16.msra.mxu0 %v2186
    %2209 = vmatprep.subr.bf16.mxu0 0
    %2210 = vmatpush1.bf16.msra.mxu0 %v2187
    %2211 = vmatprep.subr.bf16.mxu0 0
    %2212 = vmatpush1.bf16.msra.mxu0 %v2188
    %2213 = vmatprep.subr.bf16.mxu0 0
    %2214 = vmatpush1.bf16.msra.mxu0 0
    %2215 = vmatprep.subr.bf16.mxu0 0
    %2216 = vmatpush1.bf16.msra.mxu0 0
    %2217 = vmatprep.subr.bf16.mxu0 0
    %2218 = vmatpush1.bf16.msra.mxu0 0
    %2219 = vmatprep.subr.bf16.mxu0 0
    %2220 = vmatpush1.bf16.msra.mxu0 0
    %2221 = vmatprep.subr.bf16.mxu0 0
    %2222 = vmatpush1.bf16.msra.mxu0 0
    %2223 = vmatprep.subr.bf16.mxu0 0
    %2224 = vmatpush1.bf16.msra.mxu0 0
    %2225 = vmatprep.subr.bf16.mxu0 0
    %2226 = vmatpush1.bf16.msra.mxu0 0
    %2227 = vmatprep.subr.bf16.mxu0 0
    %2228 = vmatpush1.bf16.msra.mxu0 0
    %2229 = vmatprep.mubr.bf16.mxu0 0
    %2230 = vmatmul.mubr.bf16.gmra.mrb[0].mxu0 %v2045
    %v2231 = vpop.f32.mrb[0].mxu0
    %v2232 = vadd.f32 %v2043, %v2231
    %v2233 = vpop.f32.mrb[0].mxu0
    %v2234 = vpop.f32.mrb[0].mxu0
    %v2235 = vadd.f32 %v2043, %v2234
    %v2236 = vpop.f32.mrb[0].mxu0
    %2237 = vmatprep.mubr.bf16.mxu0 0
    %2238 = vmatmul.mubr.bf16.gmra.mrb[0].mxu0 %v2046
    %v2239 = vpop.f32.mrb[0].mxu0
    %v2240 = vadd.f32 %v2043, %v2239
    %v2241 = vpop.f32.mrb[0].mxu0
    %v2242 = vpop.f32.mrb[0].mxu0
    %v2243 = vadd.f32 %v2043, %v2242
    %v2244 = vpop.f32.mrb[0].mxu0
    %2245 = vmatprep.mubr.bf16.mxu0 0
    %2246 = vmatmul.mubr.bf16.gmra.mrb[0].mxu0 %v2047
    %v2247 = vpop.f32.mrb[0].mxu0
    %v2248 = vadd.f32 %v2043, %v2247
    %v2249 = vpop.f32.mrb[0].mxu0
    %v2250 = vpop.f32.mrb[0].mxu0
    %v2251 = vadd.f32 %v2043, %v2250
    %v2252 = vpop.f32.mrb[0].mxu0
    %2253 = vmatprep.mubr.bf16.mxu0 0
    %2254 = vmatmul.mubr.bf16.gmra.mrb[0].mxu0 %v2048
    %v2255 = vpop.f32.mrb[0].mxu0
    %v2256 = vadd.f32 %v2043, %v2255
    %v2257 = vpop.f32.mrb[0].mxu0
    %v2258 = vpop.f32.mrb[0].mxu0
    %v2259 = vadd.f32 %v2043, %v2258
    %v2260 = vpop.f32.mrb[0].mxu0
    %2261 = vmatprep.mubr.bf16.mxu0 0
    %2262 = vmatmul.mubr.bf16.gmra.mrb[0].mxu0 %v2049
    %v2263 = vpop.f32.mrb[0].mxu0
    %v2264 = vadd.f32 %v2043, %v2263
    %v2265 = vpop.f32.mrb[0].mxu0
    %v2266 = vpop.f32.mrb[0].mxu0
    %v2267 = vadd.f32 %v2043, %v2266
    %v2268 = vpop.f32.mrb[0].mxu0
    %2269 = vmatprep.mubr.bf16.mxu0 0
    %2270 = vmatmul.mubr.bf16.gmra.mrb[0].mxu0 %v2050
    %v2271 = vpop.f32.mrb[0].mxu0
    %v2272 = vadd.f32 %v2043, %v2271
    %v2273 = vpop.f32.mrb[0].mxu0
    %v2274 = vpop.f32.mrb[0].mxu0
    %v2275 = vadd.f32 %v2043, %v2274
    %v2276 = vpop.f32.mrb[0].mxu0
    %2277 = vmatprep.mubr.bf16.mxu0 0
    %2278 = vmatmul.mubr.bf16.gmra.mrb[0].mxu0 %v2051
    %v2279 = vpop.f32.mrb[0].mxu0
    %v2280 = vadd.f32 %v2043, %v2279
    %v2281 = vpop.f32.mrb[0].mxu0
    %v2282 = vpop.f32.mrb[0].mxu0
    %v2283 = vadd.f32 %v2043, %v2282
    %v2284 = vpop.f32.mrb[0].mxu0
    %2285 = vmatprep.mubr.bf16.mxu0 0
    %2286 = vmatmul.mubr.bf16.gmra.mrb[0].mxu0 %v2052
    %v2287 = vpop.f32.mrb[0].mxu0
    %v2288 = vadd.f32 %v2043, %v2287
    %v2289 = vpop.f32.mrb[0].mxu0
    %v2290 = vpop.f32.mrb[0].mxu0
    %v2291 = vadd.f32 %v2043, %v2290
    %v2292 = vpop.f32.mrb[0].mxu0
    %2293 = vmatprep.mubr.bf16.mxu0 0
    %2294 = vmatmul.mubr.bf16.gmra.mrb[0].mxu0 %v2053
    %v2295 = vpop.f32.mrb[0].mxu0
    %v2296 = vadd.f32 %v2043, %v2295
    %v2297 = vpop.f32.mrb[0].mxu0
    %v2298 = vpop.f32.mrb[0].mxu0
    %v2299 = vadd.f32 %v2043, %v2298
    %v2300 = vpop.f32.mrb[0].mxu0
    %2301 = vmatprep.mubr.bf16.mxu0 0
    %2302 = vmatmul.mubr.bf16.gmra.mrb[0].mxu0 %v2054
    %v2303 = vpop.f32.mrb[0].mxu0
    %v2304 = vadd.f32 %v2043, %v2303
    %v2305 = vpop.f32.mrb[0].mxu0
    %v2306 = vpop.f32.mrb[0].mxu0
    %v2307 = vadd.f32 %v2043, %v2306
    %v2308 = vpop.f32.mrb[0].mxu0
    %2309 = vmatprep.mubr.bf16.mxu0 0
    %2310 = vmatmul.mubr.bf16.gmra.mrb[0].mxu0 %v2055
    %v2311 = vpop.f32.mrb[0].mxu0
    %v2312 = vadd.f32 %v2043, %v2311
    %v2313 = vpop.f32.mrb[0].mxu0
    %v2314 = vpop.f32.mrb[0].mxu0
    %v2315 = vadd.f32 %v2043, %v2314
    %v2316 = vpop.f32.mrb[0].mxu0
    %2317 = vmatprep.mubr.bf16.mxu0 0
    %2318 = vmatmul.mubr.bf16.gmra.mrb[0].mxu0 %v2056
    %v2319 = vpop.f32.mrb[0].mxu0
    %v2320 = vadd.f32 %v2043, %v2319
    %v2321 = vpop.f32.mrb[0].mxu0
    %v2322 = vpop.f32.mrb[0].mxu0
    %v2323 = vadd.f32 %v2043, %v2322
    %v2324 = vpop.f32.mrb[0].mxu0
    %2325 = vmatprep.mubr.bf16.mxu0 0
    %2326 = vmatmul.mubr.bf16.gmra.mrb[0].mxu0 %v2057
    %v2327 = vpop.f32.mrb[0].mxu0
    %v2328 = vadd.f32 %v2043, %v2327
    %v2329 = vpop.f32.mrb[0].mxu0
    %v2330 = vpop.f32.mrb[0].mxu0
    %v2331 = vadd.f32 %v2043, %v2330
    %v2332 = vpop.f32.mrb[0].mxu0
    %2333 = vmatprep.mubr.bf16.mxu0 0
    %2334 = vmatmul.mubr.bf16.gmra.mrb[0].mxu0 %v2058
    %v2335 = vpop.f32.mrb[0].mxu0
    %v2336 = vadd.f32 %v2043, %v2335
    %v2337 = vpop.f32.mrb[0].mxu0
    %v2338 = vpop.f32.mrb[0].mxu0
    %v2339 = vadd.f32 %v2043, %v2338
    %v2340 = vpop.f32.mrb[0].mxu0
    %2341 = vmatprep.mubr.bf16.mxu0 0
    %2342 = vmatmul.mubr.bf16.gmra.mrb[0].mxu0 %v2059
    %v2343 = vpop.f32.mrb[0].mxu0
    %v2344 = vadd.f32 %v2043, %v2343
    %v2345 = vpop.f32.mrb[0].mxu0
    %v2346 = vpop.f32.mrb[0].mxu0
    %v2347 = vadd.f32 %v2043, %v2346
    %v2348 = vpop.f32.mrb[0].mxu0
    %2349 = vmatprep.mubr.bf16.mxu0 0
    %2350 = vmatmul.mubr.bf16.gmra.mrb[0].mxu0 %v2060
    %v2351 = vpop.f32.mrb[0].mxu0
    %v2352 = vadd.f32 %v2043, %v2351
    %v2353 = vpop.f32.mrb[0].mxu0
    %v2354 = vpop.f32.mrb[0].mxu0
    %v2355 = vadd.f32 %v2043, %v2354
    %v2356 = vpop.f32.mrb[0].mxu0
    %2357 = vmatprep.mubr.bf16.mxu0 0
    %2358 = vmatmul.mubr.bf16.gmra.mrb[0].mxu0 %v2061
    %v2359 = vpop.f32.mrb[0].mxu0
    %v2360 = vadd.f32 %v2043, %v2359
    %v2361 = vpop.f32.mrb[0].mxu0
    %v2362 = vpop.f32.mrb[0].mxu0
    %v2363 = vadd.f32 %v2043, %v2362
    %v2364 = vpop.f32.mrb[0].mxu0
    %2365 = vmatprep.mubr.bf16.mxu0 0
    %2366 = vmatmul.mubr.bf16.gmra.mrb[0].mxu0 %v2062
    %v2367 = vpop.f32.mrb[0].mxu0
    %v2368 = vadd.f32 %v2043, %v2367
    %v2369 = vpop.f32.mrb[0].mxu0
    %v2370 = vpop.f32.mrb[0].mxu0
    %v2371 = vadd.f32 %v2043, %v2370
    %v2372 = vpop.f32.mrb[0].mxu0
    %2373 = vmatprep.mubr.bf16.mxu0 0
    %2374 = vmatmul.mubr.bf16.gmra.mrb[0].mxu0 %v2063
    %v2375 = vpop.f32.mrb[0].mxu0
    %v2376 = vadd.f32 %v2043, %v2375
    %v2377 = vpop.f32.mrb[0].mxu0
    %v2378 = vpop.f32.mrb[0].mxu0
    %v2379 = vadd.f32 %v2043, %v2378
    %v2380 = vpop.f32.mrb[0].mxu0
    %2381 = vmatprep.mubr.bf16.mxu0 0
    %2382 = vmatmul.mubr.bf16.gmra.mrb[0].mxu0 %v2064
    %v2383 = vpop.f32.mrb[0].mxu0
    %v2384 = vadd.f32 %v2043, %v2383
    %v2385 = vpop.f32.mrb[0].mxu0
    %v2386 = vpop.f32.mrb[0].mxu0
    %v2387 = vadd.f32 %v2043, %v2386
    %v2388 = vpop.f32.mrb[0].mxu0
    %2389 = vmatprep.mubr.bf16.mxu0 0
    %2390 = vmatmul.mubr.bf16.gmra.mrb[0].mxu0 %v2065
    %v2391 = vpop.f32.mrb[0].mxu0
    %v2392 = vadd.f32 %v2043, %v2391
    %v2393 = vpop.f32.mrb[0].mxu0
    %v2394 = vpop.f32.mrb[0].mxu0
    %v2395 = vadd.f32 %v2043, %v2394
    %v2396 = vpop.f32.mrb[0].mxu0
    %2397 = vmatprep.mubr.bf16.mxu0 0
    %2398 = vmatmul.mubr.bf16.gmra.mrb[0].mxu0 %v2066
    %v2399 = vpop.f32.mrb[0].mxu0
    %v2400 = vadd.f32 %v2043, %v2399
    %v2401 = vpop.f32.mrb[0].mxu0
    %v2402 = vpop.f32.mrb[0].mxu0
    %v2403 = vadd.f32 %v2043, %v2402
    %v2404 = vpop.f32.mrb[0].mxu0
    %2405 = vmatprep.mubr.bf16.mxu0 0
    %2406 = vmatmul.mubr.bf16.gmra.mrb[0].mxu0 %v2067
    %v2407 = vpop.f32.mrb[0].mxu0
    %v2408 = vadd.f32 %v2043, %v2407
    %v2409 = vpop.f32.mrb[0].mxu0
    %v2410 = vpop.f32.mrb[0].mxu0
    %v2411 = vadd.f32 %v2043, %v2410
    %v2412 = vpop.f32.mrb[0].mxu0
    %2413 = vmatprep.mubr.bf16.mxu0 0
    %2414 = vmatmul.mubr.bf16.gmra.mrb[0].mxu0 %v2068
    %v2415 = vpop.f32.mrb[0].mxu0
    %v2416 = vadd.f32 %v2043, %v2415
    %v2417 = vpop.f32.mrb[0].mxu0
    %v2418 = vpop.f32.mrb[0].mxu0
    %v2419 = vadd.f32 %v2043, %v2418
    %v2420 = vpop.f32.mrb[0].mxu0
    %2421 = vmatprep.mubr.bf16.mxu0 0
    %2422 = vmatmul.mubr.bf16.gmra.mrb[0].mxu0 %v2069
    %v2423 = vpop.f32.mrb[0].mxu0
    %v2424 = vadd.f32 %v2043, %v2423
    %v2425 = vpop.f32.mrb[0].mxu0
    %v2426 = vpop.f32.mrb[0].mxu0
    %v2427 = vadd.f32 %v2043, %v2426
    %v2428 = vpop.f32.mrb[0].mxu0
    %2429 = vmatprep.mubr.bf16.mxu0 0
    %2430 = vmatmul.mubr.bf16.gmra.mrb[0].mxu0 %v2070
    %v2431 = vpop.f32.mrb[0].mxu0
    %v2432 = vadd.f32 %v2043, %v2431
    %v2433 = vpop.f32.mrb[0].mxu0
    %v2434 = vpop.f32.mrb[0].mxu0
    %v2435 = vadd.f32 %v2043, %v2434
    %v2436 = vpop.f32.mrb[0].mxu0
    %2437 = vmatprep.mubr.bf16.mxu0 0
    %2438 = vmatmul.mubr.bf16.gmra.mrb[0].mxu0 %v2071
    %v2439 = vpop.f32.mrb[0].mxu0
    %v2440 = vadd.f32 %v2043, %v2439
    %v2441 = vpop.f32.mrb[0].mxu0
    %v2442 = vpop.f32.mrb[0].mxu0
    %v2443 = vadd.f32 %v2043, %v2442
    %v2444 = vpop.f32.mrb[0].mxu0
    %2445 = vmatprep.mubr.bf16.mxu0 0
    %2446 = vmatmul.mubr.bf16.gmra.mrb[0].mxu0 %v2072
    %v2447 = vpop.f32.mrb[0].mxu0
    %v2448 = vadd.f32 %v2043, %v2447
    %v2449 = vpop.f32.mrb[0].mxu0
    %v2450 = vpop.f32.mrb[0].mxu0
    %v2451 = vadd.f32 %v2043, %v2450
    %v2452 = vpop.f32.mrb[0].mxu0
    %2453 = vmatprep.mubr.bf16.mxu0 0
    %2454 = vmatmul.mubr.bf16.gmra.mrb[0].mxu0 %v2073
    %v2455 = vpop.f32.mrb[0].mxu0
    %v2456 = vadd.f32 %v2043, %v2455
    %v2457 = vpop.f32.mrb[0].mxu0
    %v2458 = vpop.f32.mrb[0].mxu0
    %v2459 = vadd.f32 %v2043, %v2458
    %v2460 = vpop.f32.mrb[0].mxu0
    %2461 = vmatprep.mubr.bf16.mxu0 0
    %2462 = vmatmul.mubr.bf16.gmra.mrb[0].mxu0 %v2074
    %v2463 = vpop.f32.mrb[0].mxu0
    %v2464 = vadd.f32 %v2043, %v2463
    %v2465 = vpop.f32.mrb[0].mxu0
    %v2466 = vpop.f32.mrb[0].mxu0
    %v2467 = vadd.f32 %v2043, %v2466
    %v2468 = vpop.f32.mrb[0].mxu0
    %2469 = vmatprep.mubr.bf16.mxu0 0
    %2470 = vmatmul.mubr.bf16.gmra.mrb[0].mxu0 %v2075
    %v2471 = vpop.f32.mrb[0].mxu0
    %v2472 = vadd.f32 %v2043, %v2471
    %v2473 = vpop.f32.mrb[0].mxu0
    %v2474 = vpop.f32.mrb[0].mxu0
    %v2475 = vadd.f32 %v2043, %v2474
    %v2476 = vpop.f32.mrb[0].mxu0
    %2477 = vmatprep.mubr.bf16.mxu0 0
    %2478 = vmatmul.mubr.bf16.gmra.mrb[0].mxu0 %v2076
    %v2479 = vpop.f32.mrb[0].mxu0
    %v2480 = vadd.f32 %v2043, %v2479
    %v2481 = vpop.f32.mrb[0].mxu0
    %v2482 = vpop.f32.mrb[0].mxu0
    %v2483 = vadd.f32 %v2043, %v2482
    %v2484 = vpop.f32.mrb[0].mxu0
    %2485 = vmatprep.mubr.bf16.mxu0 0
    %2486 = vmatmul.mubr.bf16.gmra.mrb[0].mxu0 %v2077
    %v2487 = vpop.f32.mrb[0].mxu0
    %v2488 = vadd.f32 %v2043, %v2487
    %v2489 = vpop.f32.mrb[0].mxu0
    %v2490 = vpop.f32.mrb[0].mxu0
    %v2491 = vadd.f32 %v2043, %v2490
    %v2492 = vpop.f32.mrb[0].mxu0
    %2493 = vmatprep.mubr.bf16.mxu0 0
    %2494 = vmatmul.mubr.bf16.gmra.mrb[0].mxu0 %v2078
    %v2495 = vpop.f32.mrb[0].mxu0
    %v2496 = vadd.f32 %v2043, %v2495
    %v2497 = vpop.f32.mrb[0].mxu0
    %v2498 = vpop.f32.mrb[0].mxu0
    %v2499 = vadd.f32 %v2043, %v2498
    %v2500 = vpop.f32.mrb[0].mxu0
    %2501 = vmatprep.mubr.bf16.mxu0 0
    %2502 = vmatmul.mubr.bf16.gmra.mrb[0].mxu0 %v2079
    %v2503 = vpop.f32.mrb[0].mxu0
    %v2504 = vadd.f32 %v2043, %v2503
    %v2505 = vpop.f32.mrb[0].mxu0
    %v2506 = vpop.f32.mrb[0].mxu0
    %v2507 = vadd.f32 %v2043, %v2506
    %v2508 = vpop.f32.mrb[0].mxu0
    %2509 = vmatprep.mubr.bf16.mxu0 0
    %2510 = vmatmul.mubr.bf16.gmra.mrb[0].mxu0 %v2080
    %v2511 = vpop.f32.mrb[0].mxu0
    %v2512 = vadd.f32 %v2043, %v2511
    %v2513 = vpop.f32.mrb[0].mxu0
    %v2514 = vpop.f32.mrb[0].mxu0
    %v2515 = vadd.f32 %v2043, %v2514
    %v2516 = vpop.f32.mrb[0].mxu0
    %2517 = vmatprep.mubr.bf16.mxu0 0
    %2518 = vmatmul.mubr.bf16.gmra.mrb[0].mxu0 %v2081
    %v2519 = vpop.f32.mrb[0].mxu0
    %v2520 = vadd.f32 %v2043, %v2519
    %v2521 = vpop.f32.mrb[0].mxu0
    %v2522 = vpop.f32.mrb[0].mxu0
    %v2523 = vadd.f32 %v2043, %v2522
    %v2524 = vpop.f32.mrb[0].mxu0
    %2525 = vmatprep.mubr.bf16.mxu0 0
    %2526 = vmatmul.mubr.bf16.gmra.mrb[0].mxu0 %v2082
    %v2527 = vpop.f32.mrb[0].mxu0
    %v2528 = vadd.f32 %v2043, %v2527
    %v2529 = vpop.f32.mrb[0].mxu0
    %v2530 = vpop.f32.mrb[0].mxu0
    %v2531 = vadd.f32 %v2043, %v2530
    %v2532 = vpop.f32.mrb[0].mxu0
    %2533 = vmatprep.mubr.bf16.mxu0 0
    %2534 = vmatmul.mubr.bf16.gmra.mrb[0].mxu0 %v2083
    %v2535 = vpop.f32.mrb[0].mxu0
    %v2536 = vadd.f32 %v2043, %v2535
    %v2537 = vpop.f32.mrb[0].mxu0
    %v2538 = vpop.f32.mrb[0].mxu0
    %v2539 = vadd.f32 %v2043, %v2538
    %v2540 = vpop.f32.mrb[0].mxu0
    %2541 = vmatprep.mubr.bf16.mxu0 0
    %2542 = vmatmul.mubr.bf16.gmra.mrb[0].mxu0 %v2084
    %v2543 = vpop.f32.mrb[0].mxu0
    %v2544 = vadd.f32 %v2043, %v2543
    %v2545 = vpop.f32.mrb[0].mxu0
    %v2546 = vpop.f32.mrb[0].mxu0
    %v2547 = vadd.f32 %v2043, %v2546
    %v2548 = vpop.f32.mrb[0].mxu0
    %2549 = vmatprep.mubr.bf16.mxu0 0
    %2550 = vmatmul.mubr.bf16.gmra.mrb[0].mxu0 %v2085
    %v2551 = vpop.f32.mrb[0].mxu0
    %v2552 = vadd.f32 %v2043, %v2551
    %v2553 = vpop.f32.mrb[0].mxu0
    %v2554 = vpop.f32.mrb[0].mxu0
    %v2555 = vadd.f32 %v2043, %v2554
    %v2556 = vpop.f32.mrb[0].mxu0
    %2557 = vmatprep.mubr.bf16.mxu0 0
    %2558 = vmatmul.mubr.bf16.gmra.mrb[0].mxu0 %v2086
    %v2559 = vpop.f32.mrb[0].mxu0
    %v2560 = vadd.f32 %v2043, %v2559
    %v2561 = vpop.f32.mrb[0].mxu0
    %v2562 = vpop.f32.mrb[0].mxu0
    %v2563 = vadd.f32 %v2043, %v2562
    %v2564 = vpop.f32.mrb[0].mxu0
    %2565 = vmatprep.mubr.bf16.mxu0 0
    %2566 = vmatmul.mubr.bf16.gmra.mrb[0].mxu0 %v2087
    %v2567 = vpop.f32.mrb[0].mxu0
    %v2568 = vadd.f32 %v2043, %v2567
    %v2569 = vpop.f32.mrb[0].mxu0
    %v2570 = vpop.f32.mrb[0].mxu0
    %v2571 = vadd.f32 %v2043, %v2570
    %v2572 = vpop.f32.mrb[0].mxu0
    %2573 = vmatprep.mubr.bf16.mxu0 0
    %2574 = vmatmul.mubr.bf16.gmra.mrb[0].mxu0 %v2088
    %v2575 = vpop.f32.mrb[0].mxu0
    %v2576 = vadd.f32 %v2043, %v2575
    %v2577 = vpop.f32.mrb[0].mxu0
    %v2578 = vpop.f32.mrb[0].mxu0
    %v2579 = vadd.f32 %v2043, %v2578
    %v2580 = vpop.f32.mrb[0].mxu0
    %2581 = vmatprep.mubr.bf16.mxu0 0
    %2582 = vmatmul.mubr.bf16.gmra.mrb[0].mxu0 %v2089
    %v2583 = vpop.f32.mrb[0].mxu0
    %v2584 = vadd.f32 %v2043, %v2583
    %v2585 = vpop.f32.mrb[0].mxu0
    %v2586 = vpop.f32.mrb[0].mxu0
    %v2587 = vadd.f32 %v2043, %v2586
    %v2588 = vpop.f32.mrb[0].mxu0
    %2589 = vmatprep.mubr.bf16.mxu0 0
    %2590 = vmatmul.mubr.bf16.gmra.mrb[0].mxu0 %v2090
    %v2591 = vpop.f32.mrb[0].mxu0
    %v2592 = vadd.f32 %v2043, %v2591
    %v2593 = vpop.f32.mrb[0].mxu0
    %v2594 = vpop.f32.mrb[0].mxu0
    %v2595 = vadd.f32 %v2043, %v2594
    %v2596 = vpop.f32.mrb[0].mxu0
    %2597 = vmatprep.mubr.bf16.mxu0 0
    %2598 = vmatmul.mubr.bf16.gmra.mrb[0].mxu0 %v2091
    %v2599 = vpop.f32.mrb[0].mxu0
    %v2600 = vadd.f32 %v2043, %v2599
    %v2601 = vpop.f32.mrb[0].mxu0
    %v2602 = vpop.f32.mrb[0].mxu0
    %v2603 = vadd.f32 %v2043, %v2602
    %v2604 = vpop.f32.mrb[0].mxu0
    %2605 = vmatprep.mubr.bf16.mxu0 0
    %2606 = vmatmul.mubr.bf16.gmra.mrb[0].mxu0 %v2092
    %v2607 = vpop.f32.mrb[0].mxu0
    %v2608 = vadd.f32 %v2043, %v2607
    %v2609 = vpop.f32.mrb[0].mxu0
    %v2610 = vpop.f32.mrb[0].mxu0
    %v2611 = vadd.f32 %v2043, %v2610
    %v2612 = vpop.f32.mrb[0].mxu0
    %2613 = vmatprep.mubr.bf16.mxu0 0
    %2614 = vmatmul.mubr.bf16.gmra.mrb[0].mxu0 %v2093
    %v2615 = vpop.f32.mrb[0].mxu0
    %v2616 = vadd.f32 %v2043, %v2615
    %v2617 = vpop.f32.mrb[0].mxu0
    %v2618 = vpop.f32.mrb[0].mxu0
    %v2619 = vadd.f32 %v2043, %v2618
    %v2620 = vpop.f32.mrb[0].mxu0
    %2621 = vmatprep.mubr.bf16.mxu0 0
    %2622 = vmatmul.mubr.bf16.gmra.mrb[0].mxu0 %v2094
    %v2623 = vpop.f32.mrb[0].mxu0
    %v2624 = vadd.f32 %v2043, %v2623
    %v2625 = vpop.f32.mrb[0].mxu0
    %v2626 = vpop.f32.mrb[0].mxu0
    %v2627 = vadd.f32 %v2043, %v2626
    %v2628 = vpop.f32.mrb[0].mxu0
    %2629 = vmatprep.mubr.bf16.mxu0 0
    %2630 = vmatmul.mubr.bf16.gmra.mrb[0].mxu0 %v2095
    %v2631 = vpop.f32.mrb[0].mxu0
    %v2632 = vadd.f32 %v2043, %v2631
    %v2633 = vpop.f32.mrb[0].mxu0
    %v2634 = vpop.f32.mrb[0].mxu0
    %v2635 = vadd.f32 %v2043, %v2634
    %v2636 = vpop.f32.mrb[0].mxu0
    %2637 = vmatprep.mubr.bf16.mxu0 0
    %2638 = vmatmul.mubr.bf16.gmra.mrb[0].mxu0 %v2096
    %v2639 = vpop.f32.mrb[0].mxu0
    %v2640 = vadd.f32 %v2043, %v2639
    %v2641 = vpop.f32.mrb[0].mxu0
    %v2642 = vpop.f32.mrb[0].mxu0
    %v2643 = vadd.f32 %v2043, %v2642
    %v2644 = vpop.f32.mrb[0].mxu0
    %2645 = vdwg.mxu0
    %v2646 = vmax.f32 %v2232, 0.0
    %v2647 = vmax.f32 %v2235, 0.0
    %v2648 = vmax.f32 %v2240, 0.0
    %v2649 = vmax.f32 %v2243, 0.0
    %v2650 = vmax.f32 %v2248, 0.0
    %v2651 = vmax.f32 %v2251, 0.0
    %v2652 = vmax.f32 %v2256, 0.0
    %v2653 = vmax.f32 %v2259, 0.0
    %v2654 = vmax.f32 %v2264, 0.0
    %v2655 = vmax.f32 %v2267, 0.0
    %v2656 = vmax.f32 %v2272, 0.0
    %v2657 = vmax.f32 %v2275, 0.0
    %v2658 = vmax.f32 %v2280, 0.0
    %v2659 = vmax.f32 %v2283, 0.0
    %v2660 = vmax.f32 %v2288, 0.0
    %v2661 = vmax.f32 %v2291, 0.0
    %v2662 = vmax.f32 %v2296, 0.0
    %v2663 = vmax.f32 %v2299, 0.0
    %v2664 = vmax.f32 %v2304, 0.0
    %v2665 = vmax.f32 %v2307, 0.0
    %v2666 = vmax.f32 %v2312, 0.0
    %v2667 = vmax.f32 %v2315, 0.0
    %v2668 = vmax.f32 %v2320, 0.0
    %v2669 = vmax.f32 %v2323, 0.0
    %v2670 = vmax.f32 %v2328, 0.0
    %v2671 = vmax.f32 %v2331, 0.0
    %v2672 = vmax.f32 %v2336, 0.0
    %v2673 = vmax.f32 %v2339, 0.0
    %v2674 = vmax.f32 %v2344, 0.0
    %v2675 = vmax.f32 %v2347, 0.0
    %v2676 = vmax.f32 %v2352, 0.0
    %v2677 = vmax.f32 %v2355, 0.0
    %v2678 = vmax.f32 %v2360, 0.0
    %v2679 = vmax.f32 %v2363, 0.0
    %v2680 = vmax.f32 %v2368, 0.0
    %v2681 = vmax.f32 %v2371, 0.0
    %v2682 = vmax.f32 %v2376, 0.0
    %v2683 = vmax.f32 %v2379, 0.0
    %v2684 = vmax.f32 %v2384, 0.0
    %v2685 = vmax.f32 %v2387, 0.0
    %v2686 = vmax.f32 %v2392, 0.0
    %v2687 = vmax.f32 %v2395, 0.0
    %v2688 = vmax.f32 %v2400, 0.0
    %v2689 = vmax.f32 %v2403, 0.0
    %v2690 = vmax.f32 %v2408, 0.0
    %v2691 = vmax.f32 %v2411, 0.0
    %v2692 = vmax.f32 %v2416, 0.0
    %v2693 = vmax.f32 %v2419, 0.0
    %v2694 = vmax.f32 %v2424, 0.0
    %v2695 = vmax.f32 %v2427, 0.0
    %v2696 = vmax.f32 %v2432, 0.0
    %v2697 = vmax.f32 %v2435, 0.0
    %v2698 = vmax.f32 %v2440, 0.0
    %v2699 = vmax.f32 %v2443, 0.0
    %v2700 = vmax.f32 %v2448, 0.0
    %v2701 = vmax.f32 %v2451, 0.0
    %v2702 = vmax.f32 %v2456, 0.0
    %v2703 = vmax.f32 %v2459, 0.0
    %v2704 = vmax.f32 %v2464, 0.0
    %v2705 = vmax.f32 %v2467, 0.0
    %v2706 = vmax.f32 %v2472, 0.0
    %v2707 = vmax.f32 %v2475, 0.0
    %v2708 = vmax.f32 %v2480, 0.0
    %v2709 = vmax.f32 %v2483, 0.0
    %v2710 = vmax.f32 %v2488, 0.0
    %v2711 = vmax.f32 %v2491, 0.0
    %v2712 = vmax.f32 %v2496, 0.0
    %v2713 = vmax.f32 %v2499, 0.0
    %v2714 = vmax.f32 %v2504, 0.0
    %v2715 = vmax.f32 %v2507, 0.0
    %v2716 = vmax.f32 %v2512, 0.0
    %v2717 = vmax.f32 %v2515, 0.0
    %v2718 = vmax.f32 %v2520, 0.0
    %v2719 = vmax.f32 %v2523, 0.0
    %v2720 = vmax.f32 %v2528, 0.0
    %v2721 = vmax.f32 %v2531, 0.0
    %v2722 = vmax.f32 %v2536, 0.0
    %v2723 = vmax.f32 %v2539, 0.0
    %v2724 = vmax.f32 %v2544, 0.0
    %v2725 = vmax.f32 %v2547, 0.0
    %v2726 = vmax.f32 %v2552, 0.0
    %v2727 = vmax.f32 %v2555, 0.0
    %v2728 = vmax.f32 %v2560, 0.0
    %v2729 = vmax.f32 %v2563, 0.0
    %v2730 = vmax.f32 %v2568, 0.0
    %v2731 = vmax.f32 %v2571, 0.0
    %v2732 = vmax.f32 %v2576, 0.0
    %v2733 = vmax.f32 %v2579, 0.0
    %v2734 = vmax.f32 %v2584, 0.0
    %v2735 = vmax.f32 %v2587, 0.0
    %v2736 = vmax.f32 %v2592, 0.0
    %v2737 = vmax.f32 %v2595, 0.0
    %v2738 = vmax.f32 %v2600, 0.0
    %v2739 = vmax.f32 %v2603, 0.0
    %v2740 = vmax.f32 %v2608, 0.0
    %v2741 = vmax.f32 %v2611, 0.0
    %v2742 = vmax.f32 %v2616, 0.0
    %v2743 = vmax.f32 %v2619, 0.0
    %v2744 = vmax.f32 %v2624, 0.0
    %v2745 = vmax.f32 %v2627, 0.0
    %v2746 = vmax.f32 %v2632, 0.0
    %v2747 = vmax.f32 %v2635, 0.0
    %v2748 = vmax.f32 %v2640, 0.0
    %v2749 = vmax.f32 %v2643, 0.0
    %v2750 = vpack.c.bf16 %v2647, %v2646
    %v2751 = vpack.c.bf16 %v2649, %v2648
    %v2752 = vpack.c.bf16 %v2651, %v2650
    %v2753 = vpack.c.bf16 %v2653, %v2652
    %v2754 = vpack.c.bf16 %v2655, %v2654
    %v2755 = vpack.c.bf16 %v2657, %v2656
    %v2756 = vpack.c.bf16 %v2658, %v2658
    %v2757 = vpack.c.bf16 %v2660, %v2659
    %v2758 = vpack.c.bf16 %v2662, %v2661
    %v2759 = vpack.c.bf16 %v2664, %v2663
    %v2760 = vpack.c.bf16 %v2666, %v2665
    %v2761 = vpack.c.bf16 %v2668, %v2667
    %v2762 = vpack.c.bf16 %v2670, %v2669
    %v2763 = vpack.c.bf16 %v2671, %v2671
    %v2764 = vpack.c.bf16 %v2673, %v2672
    %v2765 = vpack.c.bf16 %v2675, %v2674
    %v2766 = vpack.c.bf16 %v2677, %v2676
    %v2767 = vpack.c.bf16 %v2679, %v2678
    %v2768 = vpack.c.bf16 %v2681, %v2680
    %v2769 = vpack.c.bf16 %v2683, %v2682
    %v2770 = vpack.c.bf16 %v2684, %v2684
    %v2771 = vpack.c.bf16 %v2686, %v2685
    %v2772 = vpack.c.bf16 %v2688, %v2687
    %v2773 = vpack.c.bf16 %v2690, %v2689
    %v2774 = vpack.c.bf16 %v2692, %v2691
    %v2775 = vpack.c.bf16 %v2694, %v2693
    %v2776 = vpack.c.bf16 %v2696, %v2695
    %v2777 = vpack.c.bf16 %v2697, %v2697
    %v2778 = vpack.c.bf16 %v2699, %v2698
    %v2779 = vpack.c.bf16 %v2701, %v2700
    %v2780 = vpack.c.bf16 %v2703, %v2702
    %v2781 = vpack.c.bf16 %v2705, %v2704
    %v2782 = vpack.c.bf16 %v2707, %v2706
    %v2783 = vpack.c.bf16 %v2709, %v2708
    %v2784 = vpack.c.bf16 %v2710, %v2710
    %v2785 = vpack.c.bf16 %v2712, %v2711
    %v2786 = vpack.c.bf16 %v2714, %v2713
    %v2787 = vpack.c.bf16 %v2716, %v2715
    %v2788 = vpack.c.bf16 %v2718, %v2717
    %v2789 = vpack.c.bf16 %v2720, %v2719
    %v2790 = vpack.c.bf16 %v2722, %v2721
    %v2791 = vpack.c.bf16 %v2723, %v2723
    %v2792 = vpack.c.bf16 %v2725, %v2724
    %v2793 = vpack.c.bf16 %v2727, %v2726
    %v2794 = vpack.c.bf16 %v2729, %v2728
    %v2795 = vpack.c.bf16 %v2731, %v2730
    %v2796 = vpack.c.bf16 %v2733, %v2732
    %v2797 = vpack.c.bf16 %v2735, %v2734
    %v2798 = vpack.c.bf16 %v2736, %v2736
    %v2799 = vpack.c.bf16 %v2738, %v2737
    %v2800 = vpack.c.bf16 %v2740, %v2739
    %v2801 = vpack.c.bf16 %v2742, %v2741
    %v2802 = vpack.c.bf16 %v2744, %v2743
    %v2803 = vpack.c.bf16 %v2746, %v2745
    %v2804 = vpack.c.bf16 %v2748, %v2747
    %v2805 = vpack.c.bf16 %v2749, %v2749
    %v2862 = vunpack.c.l.b16 %v2750
    %v2863 = vunpack.c.h.b16 %v2750
    %v2864 = vunpack.c.l.b16 %v2751
    %v2865 = vunpack.c.h.b16 %v2751
    %v2866 = vunpack.c.l.b16 %v2752
    %v2867 = vunpack.c.h.b16 %v2752
    %v2868 = vunpack.c.l.b16 %v2753
    %v2869 = vunpack.c.h.b16 %v2753
    %v2870 = vunpack.c.l.b16 %v2754
    %v2871 = vunpack.c.h.b16 %v2754
    %v2872 = vunpack.c.l.b16 %v2755
    %v2873 = vunpack.c.h.b16 %v2755
    %v2874 = vunpack.c.l.b16 %v2756
    %v2875 = vunpack.c.l.b16 %v2757
    %v2876 = vunpack.c.h.b16 %v2757
    %v2877 = vunpack.c.l.b16 %v2758
    %v2878 = vunpack.c.h.b16 %v2758
    %v2879 = vunpack.c.l.b16 %v2759
    %v2880 = vunpack.c.h.b16 %v2759
    %v2881 = vunpack.c.l.b16 %v2760
    %v2882 = vunpack.c.h.b16 %v2760
    %v2883 = vunpack.c.l.b16 %v2761
    %v2884 = vunpack.c.h.b16 %v2761
    %v2885 = vunpack.c.l.b16 %v2762
    %v2886 = vunpack.c.h.b16 %v2762
    %v2887 = vunpack.c.l.b16 %v2763
    %v2888 = vunpack.c.l.b16 %v2764
    %v2889 = vunpack.c.h.b16 %v2764
    %v2890 = vunpack.c.l.b16 %v2765
    %v2891 = vunpack.c.h.b16 %v2765
    %v2892 = vunpack.c.l.b16 %v2766
    %v2893 = vunpack.c.h.b16 %v2766
    %v2894 = vunpack.c.l.b16 %v2767
    %v2895 = vunpack.c.h.b16 %v2767
    %v2896 = vunpack.c.l.b16 %v2768
    %v2897 = vunpack.c.h.b16 %v2768
    %v2898 = vunpack.c.l.b16 %v2769
    %v2899 = vunpack.c.h.b16 %v2769
    %v2900 = vunpack.c.l.b16 %v2770
    %v2901 = vunpack.c.l.b16 %v2771
    %v2902 = vunpack.c.h.b16 %v2771
    %v2903 = vunpack.c.l.b16 %v2772
    %v2904 = vunpack.c.h.b16 %v2772
    %v2905 = vunpack.c.l.b16 %v2773
    %v2906 = vunpack.c.h.b16 %v2773
    %v2907 = vunpack.c.l.b16 %v2774
    %v2908 = vunpack.c.h.b16 %v2774
    %v2909 = vunpack.c.l.b16 %v2775
    %v2910 = vunpack.c.h.b16 %v2775
    %v2911 = vunpack.c.l.b16 %v2776
    %v2912 = vunpack.c.h.b16 %v2776
    %v2913 = vunpack.c.l.b16 %v2777
    %v2914 = vunpack.c.l.b16 %v2778
    %v2915 = vunpack.c.h.b16 %v2778
    %v2916 = vunpack.c.l.b16 %v2779
    %v2917 = vunpack.c.h.b16 %v2779
    %v2918 = vunpack.c.l.b16 %v2780
    %v2919 = vunpack.c.h.b16 %v2780
    %v2920 = vunpack.c.l.b16 %v2781
    %v2921 = vunpack.c.h.b16 %v2781
    %v2922 = vunpack.c.l.b16 %v2782
    %v2923 = vunpack.c.h.b16 %v2782
    %v2924 = vunpack.c.l.b16 %v2783
    %v2925 = vunpack.c.h.b16 %v2783
    %v2926 = vunpack.c.l.b16 %v2784
    %v2927 = vunpack.c.l.b16 %v2785
    %v2928 = vunpack.c.h.b16 %v2785
    %v2929 = vunpack.c.l.b16 %v2786
    %v2930 = vunpack.c.h.b16 %v2786
    %v2931 = vunpack.c.l.b16 %v2787
    %v2932 = vunpack.c.h.b16 %v2787
    %v2933 = vunpack.c.l.b16 %v2788
    %v2934 = vunpack.c.h.b16 %v2788
    %v2935 = vunpack.c.l.b16 %v2789
    %v2936 = vunpack.c.h.b16 %v2789
    %v2937 = vunpack.c.l.b16 %v2790
    %v2938 = vunpack.c.h.b16 %v2790
    %v2939 = vunpack.c.l.b16 %v2791
    %v2940 = vunpack.c.l.b16 %v2792
    %v2941 = vunpack.c.h.b16 %v2792
    %v2942 = vunpack.c.l.b16 %v2793
    %v2943 = vunpack.c.h.b16 %v2793
    %v2944 = vunpack.c.l.b16 %v2794
    %v2945 = vunpack.c.h.b16 %v2794
    %v2946 = vunpack.c.l.b16 %v2795
    %v2947 = vunpack.c.h.b16 %v2795
    %v2948 = vunpack.c.l.b16 %v2796
    %v2949 = vunpack.c.h.b16 %v2796
    %v2950 = vunpack.c.l.b16 %v2797
    %v2951 = vunpack.c.h.b16 %v2797
    %v2952 = vunpack.c.l.b16 %v2798
    %v2953 = vunpack.c.l.b16 %v2799
    %v2954 = vunpack.c.h.b16 %v2799
    %v2955 = vunpack.c.l.b16 %v2800
    %v2956 = vunpack.c.h.b16 %v2800
    %v2957 = vunpack.c.l.b16 %v2801
    %v2958 = vunpack.c.h.b16 %v2801
    %v2959 = vunpack.c.l.b16 %v2802
    %v2960 = vunpack.c.h.b16 %v2802
    %v2961 = vunpack.c.l.b16 %v2803
    %v2962 = vunpack.c.h.b16 %v2803
    %v2963 = vunpack.c.l.b16 %v2804
    %v2964 = vunpack.c.h.b16 %v2804
    %v2965 = vunpack.c.l.b16 %v2805
    %v2966 = vpack.c.b16 %v2862, %v2862
    %v2967 = vpack.c.b16 %v2863, %v2863
    %v2968 = vpack.c.b16 %v2864, %v2864
    %v2969 = vpack.c.b16 %v2865, %v2865
    %v2970 = vpack.c.b16 %v2866, %v2866
    %v2971 = vpack.c.b16 %v2867, %v2867
    %v2972 = vpack.c.b16 %v2868, %v2868
    %v2973 = vpack.c.b16 %v2869, %v2869
    %v2974 = vpack.c.b16 %v2870, %v2870
    %v2975 = vpack.c.b16 %v2871, %v2871
    %v2976 = vpack.c.b16 %v2872, %v2872
    %v2977 = vpack.c.b16 %v2873, %v2873
    %v2978 = vpack.c.b16 %v2874, %v2874
    %v2979 = vpack.c.b16 %v2875, %v2875
    %v2980 = vpack.c.b16 %v2876, %v2876
    %v2981 = vpack.c.b16 %v2877, %v2877
    %v2982 = vpack.c.b16 %v2878, %v2878
    %v2983 = vpack.c.b16 %v2879, %v2879
    %v2984 = vpack.c.b16 %v2880, %v2880
    %v2985 = vpack.c.b16 %v2881, %v2881
    %v2986 = vpack.c.b16 %v2882, %v2882
    %v2987 = vpack.c.b16 %v2883, %v2883
    %v2988 = vpack.c.b16 %v2884, %v2884
    %v2989 = vpack.c.b16 %v2885, %v2885
    %v2990 = vpack.c.b16 %v2886, %v2886
    %v2991 = vpack.c.b16 %v2887, %v2887
    %v2992 = vpack.c.b16 %v2888, %v2888
    %v2993 = vpack.c.b16 %v2889, %v2889
    %v2994 = vpack.c.b16 %v2890, %v2890
    %v2995 = vpack.c.b16 %v2891, %v2891
    %v2996 = vpack.c.b16 %v2892, %v2892
    %v2997 = vpack.c.b16 %v2893, %v2893
    %v2998 = vpack.c.b16 %v2894, %v2894
    %v2999 = vpack.c.b16 %v2895, %v2895
    %v3000 = vpack.c.b16 %v2896, %v2896
    %v3001 = vpack.c.b16 %v2897, %v2897
    %v3002 = vpack.c.b16 %v2898, %v2898
    %v3003 = vpack.c.b16 %v2899, %v2899
    %v3004 = vpack.c.b16 %v2900, %v2900
    %v3005 = vpack.c.b16 %v2901, %v2901
    %v3006 = vpack.c.b16 %v2902, %v2902
    %v3007 = vpack.c.b16 %v2903, %v2903
    %v3008 = vpack.c.b16 %v2904, %v2904
    %v3009 = vpack.c.b16 %v2905, %v2905
    %v3010 = vpack.c.b16 %v2906, %v2906
    %v3011 = vpack.c.b16 %v2907, %v2907
    %v3012 = vpack.c.b16 %v2908, %v2908
    %v3013 = vpack.c.b16 %v2909, %v2909
    %v3014 = vpack.c.b16 %v2910, %v2910
    %v3015 = vpack.c.b16 %v2911, %v2911
    %v3016 = vpack.c.b16 %v2912, %v2912
    %v3017 = vpack.c.b16 %v2913, %v2913
    %v3018 = vpack.c.b16 %v2914, %v2914
    %v3019 = vpack.c.b16 %v2915, %v2915
    %v3020 = vpack.c.b16 %v2916, %v2916
    %v3021 = vpack.c.b16 %v2917, %v2917
    %v3022 = vpack.c.b16 %v2918, %v2918
    %v3023 = vpack.c.b16 %v2919, %v2919
    %v3024 = vpack.c.b16 %v2920, %v2920
    %v3025 = vpack.c.b16 %v2921, %v2921
    %v3026 = vpack.c.b16 %v2922, %v2922
    %v3027 = vpack.c.b16 %v2923, %v2923
    %v3028 = vpack.c.b16 %v2924, %v2924
    %v3029 = vpack.c.b16 %v2925, %v2925
    %v3030 = vpack.c.b16 %v2926, %v2926
    %v3031 = vpack.c.b16 %v2927, %v2927
    %v3032 = vpack.c.b16 %v2928, %v2928
    %v3033 = vpack.c.b16 %v2929, %v2929
    %v3034 = vpack.c.b16 %v2930, %v2930
    %v3035 = vpack.c.b16 %v2931, %v2931
    %v3036 = vpack.c.b16 %v2932, %v2932
    %v3037 = vpack.c.b16 %v2933, %v2933
    %v3038 = vpack.c.b16 %v2934, %v2934
    %v3039 = vpack.c.b16 %v2935, %v2935
    %v3040 = vpack.c.b16 %v2936, %v2936
    %v3041 = vpack.c.b16 %v2937, %v2937
    %v3042 = vpack.c.b16 %v2938, %v2938
    %v3043 = vpack.c.b16 %v2939, %v2939
    %v3044 = vpack.c.b16 %v2940, %v2940
    %v3045 = vpack.c.b16 %v2941, %v2941
    %v3046 = vpack.c.b16 %v2942, %v2942
    %v3047 = vpack.c.b16 %v2943, %v2943
    %v3048 = vpack.c.b16 %v2944, %v2944
    %v3049 = vpack.c.b16 %v2945, %v2945
    %v3050 = vpack.c.b16 %v2946, %v2946
    %v3051 = vpack.c.b16 %v2947, %v2947
    %v3052 = vpack.c.b16 %v2948, %v2948
    %v3053 = vpack.c.b16 %v2949, %v2949
    %v3054 = vpack.c.b16 %v2950, %v2950
    %v3055 = vpack.c.b16 %v2951, %v2951
    %v3056 = vpack.c.b16 %v2952, %v2952
    %v3057 = vpack.c.b16 %v2953, %v2953
    %v3058 = vpack.c.b16 %v2954, %v2954
    %v3059 = vpack.c.b16 %v2955, %v2955
    %v3060 = vpack.c.b16 %v2956, %v2956
    %v3061 = vpack.c.b16 %v2957, %v2957
    %v3062 = vpack.c.b16 %v2958, %v2958
    %v3063 = vpack.c.b16 %v2959, %v2959
    %v3064 = vpack.c.b16 %v2960, %v2960
    %v3065 = vpack.c.b16 %v2961, %v2961
    %v3066 = vpack.c.b16 %v2962, %v2962
    %v3067 = vpack.c.b16 %v2963, %v2963
    %v3068 = vpack.c.b16 %v2964, %v2964
    %v3069 = vpack.c.b16 %v2965, %v2965
    %3174 = vst [vmem:[#allocation2] sm:$0xf] %v2966
    %3175 = vst [vmem:[#allocation2 + $0x4] sm:$0xf] %v2967
    %3176 = vst [vmem:[#allocation2 + $0x8] sm:$0xf] %v2968
    %3177 = vst [vmem:[#allocation2 + $0xc] sm:$0xf] %v2969
    %3178 = vst [vmem:[#allocation2 + $0x10] sm:$0xf] %v2970
    %3179 = vst [vmem:[#allocation2 + $0x14] sm:$0xf] %v2971
    %3180 = vst [vmem:[#allocation2 + $0x18] sm:$0xf] %v2972
    %3181 = vst [vmem:[#allocation2 + $0x1c] sm:$0xf] %v2973
    %3182 = vst [vmem:[#allocation2 + $0x20] sm:$0xf] %v2974
    %3183 = vst [vmem:[#allocation2 + $0x24] sm:$0xf] %v2975
    %3184 = vst [vmem:[#allocation2 + $0x28] sm:$0xf] %v2976
    %3185 = vst [vmem:[#allocation2 + $0x2c] sm:$0xf] %v2977
    %3186 = vst [vmem:[#allocation2 + $0x30] sm:$0xf] %v2978
    %3187 = vst [vmem:[#allocation2 + $0x34] sm:$0xf] %v2979
    %3188 = vst [vmem:[#allocation2 + $0x38] sm:$0xf] %v2980
    %3189 = vst [vmem:[#allocation2 + $0x3c] sm:$0xf] %v2981
    %3190 = vst [vmem:[#allocation2 + $0x40] sm:$0xf] %v2982
    %3191 = vst [vmem:[#allocation2 + $0x44] sm:$0xf] %v2983
    %3192 = vst [vmem:[#allocation2 + $0x48] sm:$0xf] %v2984
    %3193 = vst [vmem:[#allocation2 + $0x4c] sm:$0xf] %v2985
    %3194 = vst [vmem:[#allocation2 + $0x50] sm:$0xf] %v2986
    %3195 = vst [vmem:[#allocation2 + $0x54] sm:$0xf] %v2987
    %3196 = vst [vmem:[#allocation2 + $0x58] sm:$0xf] %v2988
    %3197 = vst [vmem:[#allocation2 + $0x5c] sm:$0xf] %v2989
    %3198 = vst [vmem:[#allocation2 + $0x60] sm:$0xf] %v2990
    %3199 = vst [vmem:[#allocation2 + $0x64] sm:$0xf] %v2991
    %3200 = vst [vmem:[#allocation2 + $0x68] sm:$0xf] %v2992
    %3201 = vst [vmem:[#allocation2 + $0x6c] sm:$0xf] %v2993
    %3202 = vst [vmem:[#allocation2 + $0x70] sm:$0xf] %v2994
    %3203 = vst [vmem:[#allocation2 + $0x74] sm:$0xf] %v2995
    %3204 = vst [vmem:[#allocation2 + $0x78] sm:$0xf] %v2996
    %3205 = vst [vmem:[#allocation2 + $0x7c] sm:$0xf] %v2997
    %3206 = vst [vmem:[#allocation2 + $0x80] sm:$0xf] %v2998
    %3207 = vst [vmem:[#allocation2 + $0x84] sm:$0xf] %v2999
    %3208 = vst [vmem:[#allocation2 + $0x88] sm:$0xf] %v3000
    %3209 = vst [vmem:[#allocation2 + $0x8c] sm:$0xf] %v3001
    %3210 = vst [vmem:[#allocation2 + $0x90] sm:$0xf] %v3002
    %3211 = vst [vmem:[#allocation2 + $0x94] sm:$0xf] %v3003
    %3212 = vst [vmem:[#allocation2 + $0x98] sm:$0xf] %v3004
    %3213 = vst [vmem:[#allocation2 + $0x9c] sm:$0xf] %v3005
    %3214 = vst [vmem:[#allocation2 + $0xa0] sm:$0xf] %v3006
    %3215 = vst [vmem:[#allocation2 + $0xa4] sm:$0xf] %v3007
    %3216 = vst [vmem:[#allocation2 + $0xa8] sm:$0xf] %v3008
    %3217 = vst [vmem:[#allocation2 + $0xac] sm:$0xf] %v3009
    %3218 = vst [vmem:[#allocation2 + $0xb0] sm:$0xf] %v3010
    %3219 = vst [vmem:[#allocation2 + $0xb4] sm:$0xf] %v3011
    %3220 = vst [vmem:[#allocation2 + $0xb8] sm:$0xf] %v3012
    %3221 = vst [vmem:[#allocation2 + $0xbc] sm:$0xf] %v3013
    %3222 = vst [vmem:[#allocation2 + $0xc0] sm:$0xf] %v3014
    %3223 = vst [vmem:[#allocation2 + $0xc4] sm:$0xf] %v3015
    %3224 = vst [vmem:[#allocation2 + $0xc8] sm:$0xf] %v3016
    %3225 = vst [vmem:[#allocation2 + $0xcc] sm:$0xf] %v3017
    %3226 = vst [vmem:[#allocation2 + $0xd0] sm:$0xf] %v3018
    %3227 = vst [vmem:[#allocation2 + $0xd4] sm:$0xf] %v3019
    %3228 = vst [vmem:[#allocation2 + $0xd8] sm:$0xf] %v3020
    %3229 = vst [vmem:[#allocation2 + $0xdc] sm:$0xf] %v3021
    %3230 = vst [vmem:[#allocation2 + $0xe0] sm:$0xf] %v3022
    %3231 = vst [vmem:[#allocation2 + $0xe4] sm:$0xf] %v3023
    %3232 = vst [vmem:[#allocation2 + $0xe8] sm:$0xf] %v3024
    %3233 = vst [vmem:[#allocation2 + $0xec] sm:$0xf] %v3025
    %3234 = vst [vmem:[#allocation2 + $0xf0] sm:$0xf] %v3026
    %3235 = vst [vmem:[#allocation2 + $0xf4] sm:$0xf] %v3027
    %3236 = vst [vmem:[#allocation2 + $0xf8] sm:$0xf] %v3028
    %3237 = vst [vmem:[#allocation2 + $0xfc] sm:$0xf] %v3029
    %3238 = vst [vmem:[#allocation2 + $0x100] sm:$0xf] %v3030
    %3239 = vst [vmem:[#allocation2 + $0x104] sm:$0xf] %v3031
    %3240 = vst [vmem:[#allocation2 + $0x108] sm:$0xf] %v3032
    %3241 = vst [vmem:[#allocation2 + $0x10c] sm:$0xf] %v3033
    %3242 = vst [vmem:[#allocation2 + $0x110] sm:$0xf] %v3034
    %3243 = vst [vmem:[#allocation2 + $0x114] sm:$0xf] %v3035
    %3244 = vst [vmem:[#allocation2 + $0x118] sm:$0xf] %v3036
    %3245 = vst [vmem:[#allocation2 + $0x11c] sm:$0xf] %v3037
    %3246 = vst [vmem:[#allocation2 + $0x120] sm:$0xf] %v3038
    %3247 = vst [vmem:[#allocation2 + $0x124] sm:$0xf] %v3039
    %3248 = vst [vmem:[#allocation2 + $0x128] sm:$0xf] %v3040
    %3249 = vst [vmem:[#allocation2 + $0x12c] sm:$0xf] %v3041
    %3250 = vst [vmem:[#allocation2 + $0x130] sm:$0xf] %v3042
    %3251 = vst [vmem:[#allocation2 + $0x134] sm:$0xf] %v3043
    %3252 = vst [vmem:[#allocation2 + $0x138] sm:$0xf] %v3044
    %3253 = vst [vmem:[#allocation2 + $0x13c] sm:$0xf] %v3045
    %3254 = vst [vmem:[#allocation2 + $0x140] sm:$0xf] %v3046
    %3255 = vst [vmem:[#allocation2 + $0x144] sm:$0xf] %v3047
    %3256 = vst [vmem:[#allocation2 + $0x148] sm:$0xf] %v3048
    %3257 = vst [vmem:[#allocation2 + $0x14c] sm:$0xf] %v3049
    %3258 = vst [vmem:[#allocation2 + $0x150] sm:$0xf] %v3050
    %3259 = vst [vmem:[#allocation2 + $0x154] sm:$0xf] %v3051
    %3260 = vst [vmem:[#allocation2 + $0x158] sm:$0xf] %v3052
    %3261 = vst [vmem:[#allocation2 + $0x15c] sm:$0xf] %v3053
    %3262 = vst [vmem:[#allocation2 + $0x160] sm:$0xf] %v3054
    %3263 = vst [vmem:[#allocation2 + $0x164] sm:$0xf] %v3055
    %3264 = vst [vmem:[#allocation2 + $0x168] sm:$0xf] %v3056
    %3265 = vst [vmem:[#allocation2 + $0x16c] sm:$0xf] %v3057
    %3266 = vst [vmem:[#allocation2 + $0x170] sm:$0xf] %v3058
    %3267 = vst [vmem:[#allocation2 + $0x174] sm:$0xf] %v3059
    %3268 = vst [vmem:[#allocation2 + $0x178] sm:$0xf] %v3060
    %3269 = vst [vmem:[#allocation2 + $0x17c] sm:$0xf] %v3061
    %3270 = vst [vmem:[#allocation2 + $0x180] sm:$0xf] %v3062
    %3271 = vst [vmem:[#allocation2 + $0x184] sm:$0xf] %v3063
    %3272 = vst [vmem:[#allocation2 + $0x188] sm:$0xf] %v3064
    %3273 = vst [vmem:[#allocation2 + $0x18c] sm:$0xf] %v3065
    %3274 = vst [vmem:[#allocation2 + $0x190] sm:$0xf] %v3066
    %3275 = vst [vmem:[#allocation2 + $0x194] sm:$0xf] %v3067
    %3276 = vst [vmem:[#allocation2 + $0x198] sm:$0xf] %v3068
    %3277 = vst [vmem:[#allocation2 + $0x19c] sm:$0xf] %v3069
    // Predicated region
    $region14: #{tpu_custom_call.1} parent=1 // pred_check
      _
    $region15: #{tpu_custom_call.1} parent=1 // pred_check_branch
      %3279 = sbr.rel (0) target = $region17
    $region16: #{tpu_custom_call.1} parent=1 // pred_region
      %s3281 = ssub.s32 6656, 6656
      %3282 = vsyncadd [#allocation3], %s3281
      %s3283 = sshll.u32 [#allocation2], 4
      %s3284 = int_to_ptr.vmem [resolvable:$true] %s3283
      %3289 = dma.vmem_to_hbm [thread:$0]  %s3284, 6656, %s3, [#allocation3], 64, 64, 4
    $region17: #{tpu_custom_call.1} parent=1 // pred_fallthru
      _
    // Predicated region
    $region18: #{tpu_custom_call.1} parent=1 // pred_check
      _
    $region19: #{tpu_custom_call.1} parent=1 // pred_check_branch
      %3291 = sbr.rel (0) target = $region21
    $region20: #{tpu_custom_call.1} parent=1 // pred_region
      %3292 = dma.done [#allocation3], 6656
    $region21: #{tpu_custom_call.1} parent=1 // pred_fallthru
      _
    %3293 = vsyncpa [#allocation3], 1

</llo_original>
